<compile_context>
chip_gen: v7x
topology: tpu7x:2x2x1
jax: 0.10.0
libtpu: 0.0.40
codegen_flags: <defaults>
</compile_context>

<pallas_src>
import functools

import jax
import jax.numpy as jnp
from jax.experimental import pallas as pl
from jax.experimental.pallas import tpu as pltpu

INPUT_SIZE = 2
HIDDEN_SIZE = 100
OUTPUT_SIZE = 2

PAD_H = 128          # hidden width padded to one full lane tile
PAD_O = 8            # narrow output slab; true outputs live in cols [:OUTPUT_SIZE]
NUM_HIDDEN_MM = 4    # layers 2..5


def _round_up(a, m):
    return ((a + m - 1) // m) * m


def _pinn_kernel(x_ref, w1_ref, wstack_ref, wo_ref, bstack_ref, o_ref, *,
                 act_dtype):
    """One batch tile of the 6-layer MLP; all weights resident in VMEM."""
    x = x_ref[...].astype(jnp.float32)                      # (TB, 2)
    w1 = w1_ref[...].astype(jnp.float32)                    # (2, 128)
    b = bstack_ref[...].astype(jnp.float32)                 # (8, 128): b1..b5, bo, 0, 0

    # --- layer 1: K=2 "matmul" done on the VPU as two broadcast FMAs ------
    z = x[:, 0:1] * w1[0:1, :] + x[:, 1:2] * w1[1:2, :] + b[0:1, :]
    h = jnp.tanh(z.astype(act_dtype))                       # (TB, 128)

    # --- layers 2..5: 128x128 MXU matmuls, tanh in act_dtype (EUP) --------
    for k in range(NUM_HIDDEN_MM):                          # static unroll
        y = jnp.dot(h.astype(wstack_ref.dtype), wstack_ref[k],
                    preferred_element_type=jnp.float32)
        h = jnp.tanh((y + b[k + 1:k + 2, :]).astype(act_dtype))

    # --- output layer: full 128-wide MXU matmul, store only PAD_O lanes ---
    y = (jnp.dot(h.astype(wo_ref.dtype), wo_ref[...],
                 preferred_element_type=jnp.float32)
         + b[5:6, :])                                        # (TB, 128), cols >=2 are 0
    o_ref[...] = y[:, :PAD_O].astype(o_ref.dtype)


def _pack_params(params, compute_dtype):
    """Zero-pad to lane-aligned shapes and pack into 4 kernel operands."""
    (w1, b1, w2, b2, w3, b3, w4, b4, w5, b5, wo, bo) = params

    def pad2(a, rows, cols, dtype):
        a = jnp.pad(a, ((0, rows - a.shape[0]), (0, cols - a.shape[1])))
        return a.astype(dtype)

    w1p = pad2(w1, INPUT_SIZE, PAD_H, jnp.float32)           # VPU layer stays f32
    wstack = jnp.stack([pad2(w, PAD_H, PAD_H, compute_dtype)
                        for w in (w2, w3, w4, w5)])           # (4, 128, 128)
    wop = pad2(wo, PAD_H, PAD_H, compute_dtype)               # (128, 128)
    bstack = jnp.concatenate(
        [pad2(bi, 1, PAD_H, jnp.float32) for bi in (b1, b2, b3, b4, b5, bo)]
        + [jnp.zeros((2, PAD_H), jnp.float32)], axis=0)       # (8, 128)
    return w1p, wstack, wop, bstack


@functools.partial(jax.jit,
                   static_argnames=("tile_b", "compute_dtype", "activation_dtype"))
def pinn_forward(x, params, *, tile_b=1024, compute_dtype=jnp.float32,
                 activation_dtype=None):
    """x: (B, INPUT_SIZE) f32; params: flat tuple (w1,b1,...,wo,bo) with
    weights stored (in, out) so each layer is y = x @ W + b
    (== PyTorch's x @ W_torch.T + b).

    compute_dtype: MXU operand dtype for layers 2..6 (bf16 recommended on
    v6e/v7x).  activation_dtype: tanh / inter-layer dtype; defaults to
    compute_dtype (keep it f32 on v5e: no bf16 VPU/EUP datapath there)."""
    batch = x.shape[0]

    # Guarantee >= 2 grid steps so ("parallel",) shards the batch over both
    # v7x TensorCores; harmless extra step on v5e/v6e.
    tile_b_eff = max(8, min(tile_b, _round_up(pl.cdiv(batch, 2), 8)))
    n_tiles = pl.cdiv(batch, tile_b_eff)
    padded_batch = n_tiles * tile_b_eff
    if padded_batch != batch:
        x = jnp.pad(x, ((0, padded_batch - batch), (0, 0)))

    act_dtype = compute_dtype if activation_dtype is None else activation_dtype
    packed = _pack_params(params, compute_dtype)
    w1p, wstack, wop, bstack = packed

    in_specs = [
        pl.BlockSpec((tile_b_eff, INPUT_SIZE), lambda i: (i, 0)),
        # Weights/biases: full-extent blocks, constant index_map -> VMEM-resident.
        pl.BlockSpec(w1p.shape, lambda i: (0, 0)),
        pl.BlockSpec(wstack.shape, lambda i: (0, 0, 0)),
        pl.BlockSpec(wop.shape, lambda i: (0, 0)),
        pl.BlockSpec(bstack.shape, lambda i: (0, 0)),
    ]
    out_specs = pl.BlockSpec((tile_b_eff, PAD_O), lambda i: (i, 0))

    weight_bytes = sum(int(p.size) * p.dtype.itemsize for p in packed)
    cost = pl.CostEstimate(
        flops=2 * padded_batch * (INPUT_SIZE * PAD_H
                                  + (NUM_HIDDEN_MM + 1) * PAD_H * PAD_H),
        transcendentals=5 * padded_batch * PAD_H,
        bytes_accessed=padded_batch * (INPUT_SIZE + PAD_O) * 4 + weight_bytes,
    )

    out = pl.pallas_call(
        functools.partial(_pinn_kernel, act_dtype=act_dtype),
        out_shape=jax.ShapeDtypeStruct((padded_batch, PAD_O), jnp.float32),
        grid=(n_tiles,),
        in_specs=in_specs,
        out_specs=out_specs,
        compiler_params=pltpu.CompilerParams(
            dimension_semantics=("parallel",),        # megacore split on v7x
            vmem_limit_bytes=32 * 1024 * 1024,        # ample headroom, all gens
        ),
        cost_estimate=cost,
    )(x, *packed)

    return out[:batch, :OUTPUT_SIZE]


def init_params(key):
    """Deterministic init matching PyTorch nn.Linear's U(-1/sqrt(fan_in), +)."""
    dims = ([(INPUT_SIZE, HIDDEN_SIZE)]
            + [(HIDDEN_SIZE, HIDDEN_SIZE)] * 4
            + [(HIDDEN_SIZE, OUTPUT_SIZE)])
    params = []
    for (fan_in, fan_out) in dims:
        key, kw, kb = jax.random.split(key, 3)
        bound = 1.0 / jnp.sqrt(jnp.float32(fan_in))
        # stored (in, out) so the kernel does x @ W  (== x @ W_torch.T)
        w = jax.random.uniform(kw, (fan_in, fan_out), jnp.float32, -bound, bound)
        b = jax.random.uniform(kb, (1, fan_out), jnp.float32, -bound, bound)
        params += [w, b]
    return tuple(params)


def reference_forward(x, params):
    (w1, b1, w2, b2, w3, b3, w4, b4, w5, b5, wo, bo) = params
    h = jnp.tanh(x @ w1 + b1)
    h = jnp.tanh(h @ w2 + b2)
    h = jnp.tanh(h @ w3 + b3)
    h = jnp.tanh(h @ w4 + b4)
    h = jnp.tanh(h @ w5 + b5)
    return h @ wo + bo


if __name__ == "__main__":
    key = jax.random.PRNGKey(0)
    key, kx = jax.random.split(key)

    # Small but non-trivial batch: exercises 2 grid steps + batch padding.
    batch = 300
    x = jax.random.normal(kx, (batch, INPUT_SIZE), dtype=jnp.float32)
    params = init_params(key)
    ref = reference_forward(x, params)

    # f32 path (default): exact vs reference.
    out = jax.block_until_ready(pinn_forward(x, params))
    assert out.shape == (batch, OUTPUT_SIZE)
    assert jnp.allclose(out, ref, atol=1e-5, rtol=1e-5), "f32 mismatch vs reference"

    # bf16 MXU + bf16 tanh path (the v6e/v7x fast path); loose tolerance.
    out_bf16 = jax.block_until_ready(
        pinn_forward(x, params, compute_dtype=jnp.bfloat16))
    assert out_bf16.shape == (batch, OUTPUT_SIZE)
    assert bool(jnp.all(jnp.isfinite(out_bf16)))
    assert jnp.allclose(out_bf16, ref, atol=1e-1, rtol=1e-1), "bf16 path diverged"

    # TODO(synk): on v5e call with compute_dtype=bf16, activation_dtype=f32
    # (bf16 tanh buys nothing without a bf16 EUP/VPU datapath).

    print("KERNEL_OK")
</pallas_src>

<mosaic_0001>
module attributes {stable_mosaic.version = 11 : i64} {
  func.func @_pinn_kernel(%arg0: i32, %arg1: memref<152x2xf32, #tpu.memory_space<vmem>>, %arg2: memref<2x128xf32, #tpu.memory_space<vmem>>, %arg3: memref<4x128x128xf32, #tpu.memory_space<vmem>>, %arg4: memref<128x128xf32, #tpu.memory_space<vmem>>, %arg5: memref<8x128xf32, #tpu.memory_space<vmem>>, %arg6: memref<152x8xf32, #tpu.memory_space<vmem>>) attributes {dimension_semantics = [#tpu.dimension_semantics<parallel>], iteration_bounds = array<i64: 2>, scalar_prefetch = 0 : i64, scratch_operands = 0 : i64, tpu.core_type = #tpu.core_type<tc>, window_params = [{transform_indices = @transform_0, window_bounds = array<i64: 152, 2>}, {pipeline_mode = #tpu.pipeline_mode<synchronous>, transform_indices = @transform_1, window_bounds = array<i64: 2, 128>}, {pipeline_mode = #tpu.pipeline_mode<synchronous>, transform_indices = @transform_2, window_bounds = array<i64: 4, 128, 128>}, {pipeline_mode = #tpu.pipeline_mode<synchronous>, transform_indices = @transform_3, window_bounds = array<i64: 128, 128>}, {pipeline_mode = #tpu.pipeline_mode<synchronous>, transform_indices = @transform_4, window_bounds = array<i64: 8, 128>}, {transform_indices = @transform_5, window_bounds = array<i64: 152, 8>}]} {
    %c0 = arith.constant 0 : index
    %c0_0 = arith.constant 0 : index
    %0 = vector.load %arg1[%c0, %c0_0] : memref<152x2xf32, #tpu.memory_space<vmem>>, vector<152x2xf32>
    %c0_1 = arith.constant 0 : index
    %c0_2 = arith.constant 0 : index
    %1 = vector.load %arg2[%c0_1, %c0_2] : memref<2x128xf32, #tpu.memory_space<vmem>>, vector<2x128xf32>
    %c0_3 = arith.constant 0 : index
    %c0_4 = arith.constant 0 : index
    %2 = vector.load %arg5[%c0_3, %c0_4] : memref<8x128xf32, #tpu.memory_space<vmem>>, vector<8x128xf32>
    %3 = vector.extract_strided_slice %0 {offsets = [0, 0], sizes = [152, 1], strides = [1, 1]} : vector<152x2xf32> to vector<152x1xf32>
    %4 = vector.extract_strided_slice %1 {offsets = [0, 0], sizes = [1, 128], strides = [1, 1]} : vector<2x128xf32> to vector<1x128xf32>
    %5 = vector.broadcast %3 : vector<152x1xf32> to vector<152x128xf32>
    %6 = vector.broadcast %4 : vector<1x128xf32> to vector<152x128xf32>
    %7 = arith.mulf %5, %6 : vector<152x128xf32>
    %8 = vector.extract_strided_slice %0 {offsets = [0, 1], sizes = [152, 1], strides = [1, 1]} : vector<152x2xf32> to vector<152x1xf32>
    %9 = vector.extract_strided_slice %1 {offsets = [1, 0], sizes = [1, 128], strides = [1, 1]} : vector<2x128xf32> to vector<1x128xf32>
    %10 = vector.broadcast %8 : vector<152x1xf32> to vector<152x128xf32>
    %11 = vector.broadcast %9 : vector<1x128xf32> to vector<152x128xf32>
    %12 = arith.mulf %10, %11 : vector<152x128xf32>
    %13 = arith.addf %7, %12 : vector<152x128xf32>
    %14 = vector.extract_strided_slice %2 {offsets = [0, 0], sizes = [1, 128], strides = [1, 1]} : vector<8x128xf32> to vector<1x128xf32>
    %15 = vector.broadcast %14 : vector<1x128xf32> to vector<152x128xf32>
    %16 = arith.addf %13, %15 : vector<152x128xf32>
    %17 = math.tanh %16 : vector<152x128xf32>
    %c0_5 = arith.constant 0 : index
    %c0_6 = arith.constant 0 : index
    %c0_7 = arith.constant 0 : index
    %18 = vector.load %arg3[%c0_5, %c0_6, %c0_7] : memref<4x128x128xf32, #tpu.memory_space<vmem>>, vector<1x128x128xf32>
    %19 = vector.shape_cast %18 : vector<1x128x128xf32> to vector<128x128xf32>
    %cst = arith.constant dense<0.000000e+00> : vector<152x128xf32>
    %20 = tpu.matmul %17, %19, %cst {dimension_numbers = #tpu.dot_dimension_numbers<[1], [0], [0], [1], [0, 0, 1, 1], [], []>} : vector<152x128xf32>, vector<128x128xf32>, vector<152x128xf32> -> vector<152x128xf32>
    %21 = vector.extract_strided_slice %2 {offsets = [1, 0], sizes = [1, 128], strides = [1, 1]} : vector<8x128xf32> to vector<1x128xf32>
    %22 = vector.broadcast %21 : vector<1x128xf32> to vector<152x128xf32>
    %23 = arith.addf %20, %22 : vector<152x128xf32>
    %24 = math.tanh %23 : vector<152x128xf32>
    %c1 = arith.constant 1 : index
    %c0_8 = arith.constant 0 : index
    %c0_9 = arith.constant 0 : index
    %25 = vector.load %arg3[%c1, %c0_8, %c0_9] : memref<4x128x128xf32, #tpu.memory_space<vmem>>, vector<1x128x128xf32>
    %26 = vector.shape_cast %25 : vector<1x128x128xf32> to vector<128x128xf32>
    %cst_10 = arith.constant dense<0.000000e+00> : vector<152x128xf32>
    %27 = tpu.matmul %24, %26, %cst_10 {dimension_numbers = #tpu.dot_dimension_numbers<[1], [0], [0], [1], [0, 0, 1, 1], [], []>} : vector<152x128xf32>, vector<128x128xf32>, vector<152x128xf32> -> vector<152x128xf32>
    %28 = vector.extract_strided_slice %2 {offsets = [2, 0], sizes = [1, 128], strides = [1, 1]} : vector<8x128xf32> to vector<1x128xf32>
    %29 = vector.broadcast %28 : vector<1x128xf32> to vector<152x128xf32>
    %30 = arith.addf %27, %29 : vector<152x128xf32>
    %31 = math.tanh %30 : vector<152x128xf32>
    %c2 = arith.constant 2 : index
    %c0_11 = arith.constant 0 : index
    %c0_12 = arith.constant 0 : index
    %32 = vector.load %arg3[%c2, %c0_11, %c0_12] : memref<4x128x128xf32, #tpu.memory_space<vmem>>, vector<1x128x128xf32>
    %33 = vector.shape_cast %32 : vector<1x128x128xf32> to vector<128x128xf32>
    %cst_13 = arith.constant dense<0.000000e+00> : vector<152x128xf32>
    %34 = tpu.matmul %31, %33, %cst_13 {dimension_numbers = #tpu.dot_dimension_numbers<[1], [0], [0], [1], [0, 0, 1, 1], [], []>} : vector<152x128xf32>, vector<128x128xf32>, vector<152x128xf32> -> vector<152x128xf32>
    %35 = vector.extract_strided_slice %2 {offsets = [3, 0], sizes = [1, 128], strides = [1, 1]} : vector<8x128xf32> to vector<1x128xf32>
    %36 = vector.broadcast %35 : vector<1x128xf32> to vector<152x128xf32>
    %37 = arith.addf %34, %36 : vector<152x128xf32>
    %38 = math.tanh %37 : vector<152x128xf32>
    %c3 = arith.constant 3 : index
    %c0_14 = arith.constant 0 : index
    %c0_15 = arith.constant 0 : index
    %39 = vector.load %arg3[%c3, %c0_14, %c0_15] : memref<4x128x128xf32, #tpu.memory_space<vmem>>, vector<1x128x128xf32>
    %40 = vector.shape_cast %39 : vector<1x128x128xf32> to vector<128x128xf32>
    %cst_16 = arith.constant dense<0.000000e+00> : vector<152x128xf32>
    %41 = tpu.matmul %38, %40, %cst_16 {dimension_numbers = #tpu.dot_dimension_numbers<[1], [0], [0], [1], [0, 0, 1, 1], [], []>} : vector<152x128xf32>, vector<128x128xf32>, vector<152x128xf32> -> vector<152x128xf32>
    %42 = vector.extract_strided_slice %2 {offsets = [4, 0], sizes = [1, 128], strides = [1, 1]} : vector<8x128xf32> to vector<1x128xf32>
    %43 = vector.broadcast %42 : vector<1x128xf32> to vector<152x128xf32>
    %44 = arith.addf %41, %43 : vector<152x128xf32>
    %45 = math.tanh %44 : vector<152x128xf32>
    %c0_17 = arith.constant 0 : index
    %c0_18 = arith.constant 0 : index
    %46 = vector.load %arg4[%c0_17, %c0_18] : memref<128x128xf32, #tpu.memory_space<vmem>>, vector<128x128xf32>
    %cst_19 = arith.constant dense<0.000000e+00> : vector<152x128xf32>
    %47 = tpu.matmul %45, %46, %cst_19 {dimension_numbers = #tpu.dot_dimension_numbers<[1], [0], [0], [1], [0, 0, 1, 1], [], []>} : vector<152x128xf32>, vector<128x128xf32>, vector<152x128xf32> -> vector<152x128xf32>
    %48 = vector.extract_strided_slice %2 {offsets = [5, 0], sizes = [1, 128], strides = [1, 1]} : vector<8x128xf32> to vector<1x128xf32>
    %49 = vector.broadcast %48 : vector<1x128xf32> to vector<152x128xf32>
    %50 = arith.addf %47, %49 : vector<152x128xf32>
    %51 = vector.extract_strided_slice %50 {offsets = [0, 0], sizes = [152, 8], strides = [1, 1]} : vector<152x128xf32> to vector<152x8xf32>
    %c0_20 = arith.constant 0 : index
    %c0_21 = arith.constant 0 : index
    %52 = vector.load %arg6[%c0_20, %c0_21] : memref<152x8xf32, #tpu.memory_space<vmem>>, vector<152x8xf32>
    tpu.vector_store %arg6[%c0_20, %c0_21], %51 {strides = array<i32>} : memref<152x8xf32, #tpu.memory_space<vmem>>, vector<152x8xf32>,
    return
  }
  func.func @transform_0(%arg0: i32) -> (i32, i32) {
    %c0_i32 = arith.constant 0 : i32
    %c0_i32_0 = arith.constant 0 : i32
    return %arg0, %c0_i32 : i32, i32
  }
  func.func @transform_1(%arg0: i32) -> (i32, i32) {
    %c0_i32 = arith.constant 0 : i32
    %c0_i32_0 = arith.constant 0 : i32
    %c0_i32_1 = arith.constant 0 : i32
    return %c0_i32, %c0_i32_0 : i32, i32
  }
  func.func @transform_2(%arg0: i32) -> (i32, i32, i32) {
    %c0_i32 = arith.constant 0 : i32
    %c0_i32_0 = arith.constant 0 : i32
    %c0_i32_1 = arith.constant 0 : i32
    %c0_i32_2 = arith.constant 0 : i32
    return %c0_i32, %c0_i32_0, %c0_i32_1 : i32, i32, i32
  }
  func.func @transform_3(%arg0: i32) -> (i32, i32) {
    %c0_i32 = arith.constant 0 : i32
    %c0_i32_0 = arith.constant 0 : i32
    %c0_i32_1 = arith.constant 0 : i32
    return %c0_i32, %c0_i32_0 : i32, i32
  }
  func.func @transform_4(%arg0: i32) -> (i32, i32) {
    %c0_i32 = arith.constant 0 : i32
    %c0_i32_0 = arith.constant 0 : i32
    %c0_i32_1 = arith.constant 0 : i32
    return %c0_i32, %c0_i32_0 : i32, i32
  }
  func.func @transform_5(%arg0: i32) -> (i32, i32) {
    %c0_i32 = arith.constant 0 : i32
    %c0_i32_0 = arith.constant 0 : i32
    return %arg0, %c0_i32 : i32, i32
  }
}

</mosaic_0001>

<llo_original>
// kernel: pinn_forward.1
$region0: #{pinn_forward.1}
  #allocation0 [shape = 'u32[]', space=smem, size = 0x4, offset = 0x4, fixed_abs, tag = 'smem constant byte address 0x4 - core index']
  #allocation1 [shape = 'u32[144,128]{1,0:T(1,128)}', space=vmem, size = 0x12000, scoped, tag = 'internal scratch']
  %s0 = inlined_call_operand.vmem [shape: f32[304,2], index: 0, kind: input, shape index: {}]
  %s1 = inlined_call_operand.vmem [shape: f32[2,128], index: 1, kind: input, shape index: {}]
  %s2 = inlined_call_operand.vmem [shape: f32[4,128,128], index: 2, kind: input, shape index: {}]
  %s3 = inlined_call_operand.vmem [shape: f32[128,128], index: 3, kind: input, shape index: {}]
  %s4 = inlined_call_operand.vmem [shape: f32[8,128], index: 4, kind: input, shape index: {}]
  %s5 = inlined_call_operand.vmem [shape: f32[304,8], index: 5, kind: output, shape index: {}]
  %s6 = sld [smem:[#allocation0]]
  $region53: #{pinn_forward.1} parent=0
    _
  %s8 = ssub.s32 1, %s6
  %s9 = scalar_select 0, %s8, %s6
  loop: start=0, step=1, limit=4
  $region2: #{pinn_forward.1} parent=0 // loop_pre_header
    _
  $region3: #{pinn_forward.1} parent=0 // loop_header
    %s11 = sphi 0, %s15
    %p12 = scmp.ge.s32.totalorder %s11, 4
    %s21 = sphi 0, %s23
    %s24 = sphi 0, %s21
    %s25 = sphi 0, %s24
    %s41 = sphi 0, %s25
    %s45 = sphi 0, %s45
    %s47 = sphi 0, %s45
    %s48 = sphi 0, %s47
    %s62 = sphi 0, %s48
    %s66 = sphi 0, %s66
    %s68 = sphi 0, %s66
    %s69 = sphi 0, %s68
    %s83 = sphi 0, %s69
    %s87 = sphi 0, %s87
    %s89 = sphi 0, %s87
    %s90 = sphi 0, %s89
    %s104 = sphi 0, %s90
    %s108 = sphi 0, %s108
    %s110 = sphi 0, %s108
    %s111 = sphi 0, %s110
    %s125 = sphi 0, %s111
    %s131 = sphi 0, %s133
    %s134 = sphi 0, %s131
    %s135 = sphi 0, %s134
    %s151 = sphi 0, %s135
  $region4: #{pinn_forward.1} parent=0 // loop_header_branch
    %14 = sbr.rel (%p12) target = $region8
  $region5: #{pinn_forward.1} parent=0 // loop_body
    %s16 = ssub.s32 %s11, 1
    %s17 = ssub.s32 %s11, 2
    %s18 = sadd.s32 %s11, 1
    %s19 = ssub.s32 %s11, %s18
    %p20 = scmp.eq.s32.totalorder %s19, 0
    %s22 = sadd.s32 %s21, 1
    %s23 = scalar_select %p20, %s21, %s22
    %p26 = pneg %p20
    %p27 = scmp.eq.s32.totalorder %s11, 1
    %p28 = por %p26, %p27
    %p29 = scmp.ne.s32.totalorder %s21, %s24
    %p30 = scmp.eq.s32.totalorder %s11, 0
    %p31 = por %p29, %p30
    %p32 = scmp.ne.s32.totalorder %s21, %s24
    %p33 = scmp.eq.s32.totalorder %s16, 1
    %p34 = por %p32, %p33
    %p35 = scmp.ne.s32.totalorder %s24, %s25
    %p36 = scmp.eq.s32.totalorder %s16, 0
    %p37 = por %p35, %p36
    %p38 = scmp.ne.s32.totalorder %s24, %s25
    %p39 = scmp.eq.s32.totalorder %s17, 1
    %p40 = por %p38, %p39
    %p42 = scmp.ne.s32.totalorder %s25, %s41
    %p43 = scmp.eq.s32.totalorder %s17, 0
    %p44 = por %p42, %p43
    %s46 = sadd.s32 %s45, 1
    %p49 = scmp.eq.s32.totalorder %s11, 1
    %p50 = scmp.ne.s32.totalorder %s45, %s47
    %p51 = scmp.eq.s32.totalorder %s11, 0
    %p52 = por %p50, %p51
    %p53 = scmp.ne.s32.totalorder %s45, %s47
    %p54 = scmp.eq.s32.totalorder %s16, 1
    %p55 = por %p53, %p54
    %p56 = scmp.ne.s32.totalorder %s47, %s48
    %p57 = scmp.eq.s32.totalorder %s16, 0
    %p58 = por %p56, %p57
    %p59 = scmp.ne.s32.totalorder %s47, %s48
    %p60 = scmp.eq.s32.totalorder %s17, 1
    %p61 = por %p59, %p60
    %p63 = scmp.ne.s32.totalorder %s48, %s62
    %p64 = scmp.eq.s32.totalorder %s17, 0
    %p65 = por %p63, %p64
    %s67 = sadd.s32 %s66, 1
    %p70 = scmp.eq.s32.totalorder %s11, 1
    %p71 = scmp.ne.s32.totalorder %s66, %s68
    %p72 = scmp.eq.s32.totalorder %s11, 0
    %p73 = por %p71, %p72
    %p74 = scmp.ne.s32.totalorder %s66, %s68
    %p75 = scmp.eq.s32.totalorder %s16, 1
    %p76 = por %p74, %p75
    %p77 = scmp.ne.s32.totalorder %s68, %s69
    %p78 = scmp.eq.s32.totalorder %s16, 0
    %p79 = por %p77, %p78
    %p80 = scmp.ne.s32.totalorder %s68, %s69
    %p81 = scmp.eq.s32.totalorder %s17, 1
    %p82 = por %p80, %p81
    %p84 = scmp.ne.s32.totalorder %s69, %s83
    %p85 = scmp.eq.s32.totalorder %s17, 0
    %p86 = por %p84, %p85
    %s88 = sadd.s32 %s87, 1
    %p91 = scmp.eq.s32.totalorder %s11, 1
    %p92 = scmp.ne.s32.totalorder %s87, %s89
    %p93 = scmp.eq.s32.totalorder %s11, 0
    %p94 = por %p92, %p93
    %p95 = scmp.ne.s32.totalorder %s87, %s89
    %p96 = scmp.eq.s32.totalorder %s16, 1
    %p97 = por %p95, %p96
    %p98 = scmp.ne.s32.totalorder %s89, %s90
    %p99 = scmp.eq.s32.totalorder %s16, 0
    %p100 = por %p98, %p99
    %p101 = scmp.ne.s32.totalorder %s89, %s90
    %p102 = scmp.eq.s32.totalorder %s17, 1
    %p103 = por %p101, %p102
    %p105 = scmp.ne.s32.totalorder %s90, %s104
    %p106 = scmp.eq.s32.totalorder %s17, 0
    %p107 = por %p105, %p106
    %s109 = sadd.s32 %s108, 1
    %p112 = scmp.eq.s32.totalorder %s11, 1
    %p113 = scmp.ne.s32.totalorder %s108, %s110
    %p114 = scmp.eq.s32.totalorder %s11, 0
    %p115 = por %p113, %p114
    %p116 = scmp.ne.s32.totalorder %s108, %s110
    %p117 = scmp.eq.s32.totalorder %s16, 1
    %p118 = por %p116, %p117
    %p119 = scmp.ne.s32.totalorder %s110, %s111
    %p120 = scmp.eq.s32.totalorder %s16, 0
    %p121 = por %p119, %p120
    %p122 = scmp.ne.s32.totalorder %s110, %s111
    %p123 = scmp.eq.s32.totalorder %s17, 1
    %p124 = por %p122, %p123
    %p126 = scmp.ne.s32.totalorder %s111, %s125
    %p127 = scmp.eq.s32.totalorder %s17, 0
    %p128 = por %p126, %p127
    %s129 = ssub.s32 %s11, %s18
    %p130 = scmp.eq.s32.totalorder %s129, 0
    %s132 = sadd.s32 %s131, 1
    %s133 = scalar_select %p130, %s131, %s132
    %p136 = pneg %p130
    %p137 = scmp.eq.s32.totalorder %s11, 1
    %p138 = por %p136, %p137
    %p139 = scmp.ne.s32.totalorder %s131, %s134
    %p140 = scmp.eq.s32.totalorder %s11, 0
    %p141 = por %p139, %p140
    %p142 = scmp.ne.s32.totalorder %s131, %s134
    %p143 = scmp.eq.s32.totalorder %s16, 1
    %p144 = por %p142, %p143
    %p145 = scmp.ne.s32.totalorder %s134, %s135
    %p146 = scmp.eq.s32.totalorder %s16, 0
    %p147 = por %p145, %p146
    %p148 = scmp.ne.s32.totalorder %s134, %s135
    %p149 = scmp.eq.s32.totalorder %s17, 1
    %p150 = por %p148, %p149
    %p152 = scmp.ne.s32.totalorder %s135, %s151
    %p153 = scmp.eq.s32.totalorder %s17, 0
    %p154 = por %p152, %p153
    %p155 = scmp.le.s32.totalorder 1, %s11
    %p156 = scmp.lt.s32.totalorder %s11, 3
    %p157 = pnand %p155, %p156
    %p158 = pneg %p157
    // Predicated region
    $region9: #{pinn_forward.1} parent=5 // pred_check
      _
    $region10: #{pinn_forward.1} parent=5 // pred_check_branch
      %160 = sbr.rel (%p157) target = $region12
    $region11: #{pinn_forward.1} parent=5 // pred_region
      %s161 = ssub.s32 %s11, 1
      // Predicated region
      $region13: #{pinn_forward.1} parent=11 // pred_check
        %p162 = pneg %p58
      $region14: #{pinn_forward.1} parent=11 // pred_check_branch
        %164 = sbr.rel (%p162) target = $region16
      $region15: #{pinn_forward.1} parent=11 // pred_region
        _
      $region16: #{pinn_forward.1} parent=11 // pred_fallthru
        _
      // Predicated region
      $region17: #{pinn_forward.1} parent=11 // pred_check
        %p165 = pneg %p79
      $region18: #{pinn_forward.1} parent=11 // pred_check_branch
        %167 = sbr.rel (%p165) target = $region20
      $region19: #{pinn_forward.1} parent=11 // pred_region
        _
      $region20: #{pinn_forward.1} parent=11 // pred_fallthru
        _
      // Predicated region
      $region21: #{pinn_forward.1} parent=11 // pred_check
        %p168 = pneg %p100
      $region22: #{pinn_forward.1} parent=11 // pred_check_branch
        %170 = sbr.rel (%p168) target = $region24
      $region23: #{pinn_forward.1} parent=11 // pred_region
        _
      $region24: #{pinn_forward.1} parent=11 // pred_fallthru
        _
      // Predicated region
      $region25: #{pinn_forward.1} parent=11 // pred_check
        %p171 = pneg %p121
      $region26: #{pinn_forward.1} parent=11 // pred_check_branch
        %173 = sbr.rel (%p171) target = $region28
      $region27: #{pinn_forward.1} parent=11 // pred_region
        _
      $region28: #{pinn_forward.1} parent=11 // pred_fallthru
        _
    $region12: #{pinn_forward.1} parent=5 // pred_fallthru
      _
    %p174 = scmp.lt.s32.totalorder %s11, 2
    // Predicated region
    $region29: #{pinn_forward.1} parent=5 // pred_check
      %p175 = pneg %p174
    $region30: #{pinn_forward.1} parent=5 // pred_check_branch
      %177 = sbr.rel (%p175) target = $region32
    $region31: #{pinn_forward.1} parent=5 // pred_region
      // Predicated region
      $region33: #{pinn_forward.1} parent=31 // pred_check
        %p178 = pneg %p31
      $region34: #{pinn_forward.1} parent=31 // pred_check_branch
        %180 = sbr.rel (%p178) target = $region36
      $region35: #{pinn_forward.1} parent=31 // pred_region
        %s181 = smul.u32 19, %s11
        %p182 = scmp.lt.s32.totalorder %s181, 37
        %s183 = scalar_select %p182, %s181, 37
        %s184 = smul.addr %s183, 8
        %s185 = scalar_lea.vmem %s0, %s184
        %s186 = smul.u32 19, %s11
      $region36: #{pinn_forward.1} parent=31 // pred_fallthru
        _
    $region32: #{pinn_forward.1} parent=5 // pred_fallthru
      _
    %p187 = scmp.le.s32.totalorder 1, %s11
    %p188 = scmp.lt.s32.totalorder %s11, 3
    %p189 = pnand %p187, %p188
    %p190 = pneg %p189
    // Predicated region
    $region37: #{pinn_forward.1} parent=5 // pred_check
      _
    $region38: #{pinn_forward.1} parent=5 // pred_check_branch
      %192 = sbr.rel (%p189) target = $region40
    $region39: #{pinn_forward.1} parent=5 // pred_region
      %s193 = ssub.s32 %s11, 1
      %s194 = smul.u32 19, %s16
      %p195 = scmp.lt.s32.totalorder %s194, 37
      %s196 = scalar_select %p195, %s194, 37
      %s197 = smul.addr %s196, 8
      %s198 = scalar_lea.vmem %s0, %s197
      %p199 = pneg %p37
      %p200 = pneg %p34
      %p201 = pneg %p58
      %p202 = pneg %p55
      %p203 = pneg %p79
      %p204 = pneg %p76
      %p205 = pneg %p100
      %p206 = pneg %p97
      %p207 = pneg %p121
      %p208 = pneg %p118
      %p209 = pneg %p147
      %p210 = pneg %p144
      %s211 = smul.u32 19, %s16
      %p212 = scmp.lt.s32.totalorder %s211, 37
      %s213 = scalar_select %p212, %s211, 37
      %s214 = smul.addr %s213, 8
      %s215 = scalar_lea.vmem %s5, %s214
      %s216 = smul.u32 19, %s16
      %p217 = scmp.lt.s32.totalorder %s216, 37
      %s218 = scalar_select %p217, %s216, 37
      %s219 = smul.addr %s218, 8
      %s220 = scalar_lea.vmem %s0, %s219
      %s221 = smul.u32 19, %s16
      %s222 = smul.u32 19, %s16
      %p223 = scmp.lt.s32.totalorder %s222, 37
      %s224 = scalar_select %p223, %s222, 37
      %s225 = smul.addr %s224, 8
      %s226 = scalar_lea.vmem %s5, %s225
      %s227 = smul.u32 19, %s16
      %v228 = vld [vmem:[%s220] sm:$0xff]
      %v229 = vld [vmem:[%s220 + $0x8] sm:$0xff]
      %v230 = vld [vmem:[%s220 + $0x10] sm:$0xff]
      %v231 = vld [vmem:[%s220 + $0x18] sm:$0xff]
      %v232 = vld [vmem:[%s220 + $0x20] sm:$0xff]
      %v233 = vld [vmem:[%s220 + $0x28] sm:$0xff]
      %v234 = vld [vmem:[%s220 + $0x30] sm:$0xff]
      %v235 = vld [vmem:[%s220 + $0x38] sm:$0xff]
      %v236 = vld [vmem:[%s220 + $0x40] sm:$0xff]
      %v237 = vld [vmem:[%s220 + $0x48] sm:$0xff]
      %v238 = vld [vmem:[%s220 + $0x50] sm:$0xff]
      %v239 = vld [vmem:[%s220 + $0x58] sm:$0xff]
      %v240 = vld [vmem:[%s220 + $0x60] sm:$0xff]
      %v241 = vld [vmem:[%s220 + $0x68] sm:$0xff]
      %v242 = vld [vmem:[%s220 + $0x70] sm:$0xff]
      %v243 = vld [vmem:[%s220 + $0x78] sm:$0xff]
      %v244 = vld [vmem:[%s220 + $0x80] sm:$0xff]
      %v245 = vld [vmem:[%s220 + $0x88] sm:$0xff]
      %v246 = vld [vmem:[%s220 + $0x90] sm:$0xff]
      %v247 = vld [vmem:[%s1] sm:$0x3]
      %v248 = vld [vmem:[%s4] sm:$0xff]
      %250 = vset.pattern.permute.xlu0 0
      %251 = vperm.xlu0 %250, %v228
      %v252 = vpop.permute.xlu0 %251
      %255 = vset.pattern.permute.xlu0 0
      %256 = vperm.xlu0 %255, %v229
      %v257 = vpop.permute.xlu0 %256
      %260 = vset.pattern.permute.xlu0 0
      %261 = vperm.xlu0 %260, %v230
      %v262 = vpop.permute.xlu0 %261
      %265 = vset.pattern.permute.xlu0 0
      %266 = vperm.xlu0 %265, %v231
      %v267 = vpop.permute.xlu0 %266
      %270 = vset.pattern.permute.xlu0 0
      %271 = vperm.xlu0 %270, %v232
      %v272 = vpop.permute.xlu0 %271
      %275 = vset.pattern.permute.xlu0 0
      %276 = vperm.xlu0 %275, %v233
      %v277 = vpop.permute.xlu0 %276
      %280 = vset.pattern.permute.xlu0 0
      %281 = vperm.xlu0 %280, %v234
      %v282 = vpop.permute.xlu0 %281
      %285 = vset.pattern.permute.xlu0 0
      %286 = vperm.xlu0 %285, %v235
      %v287 = vpop.permute.xlu0 %286
      %290 = vset.pattern.permute.xlu0 0
      %291 = vperm.xlu0 %290, %v236
      %v292 = vpop.permute.xlu0 %291
      %295 = vset.pattern.permute.xlu0 0
      %296 = vperm.xlu0 %295, %v237
      %v297 = vpop.permute.xlu0 %296
      %300 = vset.pattern.permute.xlu0 0
      %301 = vperm.xlu0 %300, %v238
      %v302 = vpop.permute.xlu0 %301
      %305 = vset.pattern.permute.xlu0 0
      %306 = vperm.xlu0 %305, %v239
      %v307 = vpop.permute.xlu0 %306
      %310 = vset.pattern.permute.xlu0 0
      %311 = vperm.xlu0 %310, %v240
      %v312 = vpop.permute.xlu0 %311
      %315 = vset.pattern.permute.xlu0 0
      %316 = vperm.xlu0 %315, %v241
      %v317 = vpop.permute.xlu0 %316
      %320 = vset.pattern.permute.xlu0 0
      %321 = vperm.xlu0 %320, %v242
      %v322 = vpop.permute.xlu0 %321
      %325 = vset.pattern.permute.xlu0 0
      %326 = vperm.xlu0 %325, %v243
      %v327 = vpop.permute.xlu0 %326
      %330 = vset.pattern.permute.xlu0 0
      %331 = vperm.xlu0 %330, %v244
      %v332 = vpop.permute.xlu0 %331
      %335 = vset.pattern.permute.xlu0 0
      %336 = vperm.xlu0 %335, %v245
      %v337 = vpop.permute.xlu0 %336
      %340 = vset.pattern.permute.xlu0 0
      %341 = vperm.xlu0 %340, %v246
      %v342 = vpop.permute.xlu0 %341
      %v344 = vlaneseq
      %v345 = vshrl.u32 %v344, 7
      %v346 = vsub.s32 0, %v345
      %v347 = vrot.slane %v247, %v346
      %v348 = vmul.f32 %v252, %v347
      %v349 = vmul.f32 %v257, %v347
      %v350 = vmul.f32 %v262, %v347
      %v351 = vmul.f32 %v267, %v347
      %v352 = vmul.f32 %v272, %v347
      %v353 = vmul.f32 %v277, %v347
      %v354 = vmul.f32 %v282, %v347
      %v355 = vmul.f32 %v287, %v347
      %v356 = vmul.f32 %v292, %v347
      %v357 = vmul.f32 %v297, %v347
      %v358 = vmul.f32 %v302, %v347
      %v359 = vmul.f32 %v307, %v347
      %v360 = vmul.f32 %v312, %v347
      %v361 = vmul.f32 %v317, %v347
      %v362 = vmul.f32 %v322, %v347
      %v363 = vmul.f32 %v327, %v347
      %v364 = vmul.f32 %v332, %v347
      %v365 = vmul.f32 %v337, %v347
      %v366 = vmul.f32 %v342, %v347
      %367 = vset.pattern.permute.xlu0 1
      %368 = vperm.xlu0 %367, %v228
      %v369 = vpop.permute.xlu0 %368
      %371 = vset.pattern.permute.xlu0 1
      %372 = vperm.xlu0 %371, %v229
      %v373 = vpop.permute.xlu0 %372
      %375 = vset.pattern.permute.xlu0 1
      %376 = vperm.xlu0 %375, %v230
      %v377 = vpop.permute.xlu0 %376
      %379 = vset.pattern.permute.xlu0 1
      %380 = vperm.xlu0 %379, %v231
      %v381 = vpop.permute.xlu0 %380
      %383 = vset.pattern.permute.xlu0 1
      %384 = vperm.xlu0 %383, %v232
      %v385 = vpop.permute.xlu0 %384
      %387 = vset.pattern.permute.xlu0 1
      %388 = vperm.xlu0 %387, %v233
      %v389 = vpop.permute.xlu0 %388
      %391 = vset.pattern.permute.xlu0 1
      %392 = vperm.xlu0 %391, %v234
      %v393 = vpop.permute.xlu0 %392
      %395 = vset.pattern.permute.xlu0 1
      %396 = vperm.xlu0 %395, %v235
      %v397 = vpop.permute.xlu0 %396
      %399 = vset.pattern.permute.xlu0 1
      %400 = vperm.xlu0 %399, %v236
      %v401 = vpop.permute.xlu0 %400
      %403 = vset.pattern.permute.xlu0 1
      %404 = vperm.xlu0 %403, %v237
      %v405 = vpop.permute.xlu0 %404
      %407 = vset.pattern.permute.xlu0 1
      %408 = vperm.xlu0 %407, %v238
      %v409 = vpop.permute.xlu0 %408
      %411 = vset.pattern.permute.xlu0 1
      %412 = vperm.xlu0 %411, %v239
      %v413 = vpop.permute.xlu0 %412
      %415 = vset.pattern.permute.xlu0 1
      %416 = vperm.xlu0 %415, %v240
      %v417 = vpop.permute.xlu0 %416
      %419 = vset.pattern.permute.xlu0 1
      %420 = vperm.xlu0 %419, %v241
      %v421 = vpop.permute.xlu0 %420
      %423 = vset.pattern.permute.xlu0 1
      %424 = vperm.xlu0 %423, %v242
      %v425 = vpop.permute.xlu0 %424
      %427 = vset.pattern.permute.xlu0 1
      %428 = vperm.xlu0 %427, %v243
      %v429 = vpop.permute.xlu0 %428
      %431 = vset.pattern.permute.xlu0 1
      %432 = vperm.xlu0 %431, %v244
      %v433 = vpop.permute.xlu0 %432
      %435 = vset.pattern.permute.xlu0 1
      %436 = vperm.xlu0 %435, %v245
      %v437 = vpop.permute.xlu0 %436
      %439 = vset.pattern.permute.xlu0 1
      %440 = vperm.xlu0 %439, %v246
      %v441 = vpop.permute.xlu0 %440
      %v443 = vlaneseq
      %v444 = vshrl.u32 %v443, 7
      %v445 = vsub.s32 1, %v444
      %v446 = vrot.slane %v247, %v445
      %v447 = vmul.f32 %v369, %v446
      %v448 = vmul.f32 %v373, %v446
      %v449 = vmul.f32 %v377, %v446
      %v450 = vmul.f32 %v381, %v446
      %v451 = vmul.f32 %v385, %v446
      %v452 = vmul.f32 %v389, %v446
      %v453 = vmul.f32 %v393, %v446
      %v454 = vmul.f32 %v397, %v446
      %v455 = vmul.f32 %v401, %v446
      %v456 = vmul.f32 %v405, %v446
      %v457 = vmul.f32 %v409, %v446
      %v458 = vmul.f32 %v413, %v446
      %v459 = vmul.f32 %v417, %v446
      %v460 = vmul.f32 %v421, %v446
      %v461 = vmul.f32 %v425, %v446
      %v462 = vmul.f32 %v429, %v446
      %v463 = vmul.f32 %v433, %v446
      %v464 = vmul.f32 %v437, %v446
      %v465 = vmul.f32 %v441, %v446
      %v466 = vadd.f32 %v348, %v447
      %v467 = vadd.f32 %v349, %v448
      %v468 = vadd.f32 %v350, %v449
      %v469 = vadd.f32 %v351, %v450
      %v470 = vadd.f32 %v352, %v451
      %v471 = vadd.f32 %v353, %v452
      %v472 = vadd.f32 %v354, %v453
      %v473 = vadd.f32 %v355, %v454
      %v474 = vadd.f32 %v356, %v455
      %v475 = vadd.f32 %v357, %v456
      %v476 = vadd.f32 %v358, %v457
      %v477 = vadd.f32 %v359, %v458
      %v478 = vadd.f32 %v360, %v459
      %v479 = vadd.f32 %v361, %v460
      %v480 = vadd.f32 %v362, %v461
      %v481 = vadd.f32 %v363, %v462
      %v482 = vadd.f32 %v364, %v463
      %v483 = vadd.f32 %v365, %v464
      %v484 = vadd.f32 %v366, %v465
      %v485 = vlaneseq
      %v486 = vshrl.u32 %v485, 7
      %v487 = vsub.s32 0, %v486
      %v488 = vrot.slane %v248, %v487
      %v489 = vadd.f32 %v466, %v488
      %v490 = vadd.f32 %v467, %v488
      %v491 = vadd.f32 %v468, %v488
      %v492 = vadd.f32 %v469, %v488
      %v493 = vadd.f32 %v470, %v488
      %v494 = vadd.f32 %v471, %v488
      %v495 = vadd.f32 %v472, %v488
      %v496 = vadd.f32 %v473, %v488
      %v497 = vadd.f32 %v474, %v488
      %v498 = vadd.f32 %v475, %v488
      %v499 = vadd.f32 %v476, %v488
      %v500 = vadd.f32 %v477, %v488
      %v501 = vadd.f32 %v478, %v488
      %v502 = vadd.f32 %v479, %v488
      %v503 = vadd.f32 %v480, %v488
      %v504 = vadd.f32 %v481, %v488
      %v505 = vadd.f32 %v482, %v488
      %v506 = vadd.f32 %v483, %v488
      %v507 = vadd.f32 %v484, %v488
      %v508 = vtanh.pop %v489
      %v509 = vtanh.pop %v490
      %v510 = vtanh.pop %v491
      %v511 = vtanh.pop %v492
      %v512 = vtanh.pop %v493
      %v513 = vtanh.pop %v494
      %v514 = vtanh.pop %v495
      %v515 = vtanh.pop %v496
      %v516 = vtanh.pop %v497
      %v517 = vtanh.pop %v498
      %v518 = vtanh.pop %v499
      %v519 = vtanh.pop %v500
      %v520 = vtanh.pop %v501
      %v521 = vtanh.pop %v502
      %v522 = vtanh.pop %v503
      %v523 = vtanh.pop %v504
      %v524 = vtanh.pop %v505
      %v525 = vtanh.pop %v506
      %v526 = vtanh.pop %v507
      %v527 = vld [vmem:[%s2] sm:$0xff]
      %v528 = vld [vmem:[%s2 + $0x8] sm:$0xff]
      %v529 = vld [vmem:[%s2 + $0x10] sm:$0xff]
      %v530 = vld [vmem:[%s2 + $0x18] sm:$0xff]
      %v531 = vld [vmem:[%s2 + $0x20] sm:$0xff]
      %v532 = vld [vmem:[%s2 + $0x28] sm:$0xff]
      %v533 = vld [vmem:[%s2 + $0x30] sm:$0xff]
      %v534 = vld [vmem:[%s2 + $0x38] sm:$0xff]
      %v535 = vld [vmem:[%s2 + $0x40] sm:$0xff]
      %v536 = vld [vmem:[%s2 + $0x48] sm:$0xff]
      %v537 = vld [vmem:[%s2 + $0x50] sm:$0xff]
      %v538 = vld [vmem:[%s2 + $0x58] sm:$0xff]
      %v539 = vld [vmem:[%s2 + $0x60] sm:$0xff]
      %v540 = vld [vmem:[%s2 + $0x68] sm:$0xff]
      %v541 = vld [vmem:[%s2 + $0x70] sm:$0xff]
      %v542 = vld [vmem:[%s2 + $0x78] sm:$0xff]
      %v543 = vlaneseq
      %v544 = vshrl.u32 %v543, 7
      %v545 = vsub.s32 1, %v544
      %v546 = vrot.slane %v248, %v545
      %547 = vmatprep.subr.mxu0 0.0
      %548 = vmatpush1.msra.mxu0 %v527
      %549 = vmatprep.subr.mxu0 0.0
      %550 = vmatpush1.msra.mxu0 %v528
      %551 = vmatprep.subr.mxu0 0.0
      %552 = vmatpush1.msra.mxu0 %v529
      %553 = vmatprep.subr.mxu0 0.0
      %554 = vmatpush1.msra.mxu0 %v530
      %555 = vmatprep.subr.mxu0 0.0
      %556 = vmatpush1.msra.mxu0 %v531
      %557 = vmatprep.subr.mxu0 0.0
      %558 = vmatpush1.msra.mxu0 %v532
      %559 = vmatprep.subr.mxu0 0.0
      %560 = vmatpush1.msra.mxu0 %v533
      %561 = vmatprep.subr.mxu0 0.0
      %562 = vmatpush1.msra.mxu0 %v534
      %563 = vmatprep.subr.mxu0 0.0
      %564 = vmatpush1.msra.mxu0 %v535
      %565 = vmatprep.subr.mxu0 0.0
      %566 = vmatpush1.msra.mxu0 %v536
      %567 = vmatprep.subr.mxu0 0.0
      %568 = vmatpush1.msra.mxu0 %v537
      %569 = vmatprep.subr.mxu0 0.0
      %570 = vmatpush1.msra.mxu0 %v538
      %571 = vmatprep.subr.mxu0 0.0
      %572 = vmatpush1.msra.mxu0 %v539
      %573 = vmatprep.subr.mxu0 0.0
      %574 = vmatpush1.msra.mxu0 %v540
      %575 = vmatprep.subr.mxu0 0.0
      %576 = vmatpush1.msra.mxu0 %v541
      %577 = vmatprep.subr.mxu0 0.0
      %578 = vmatpush1.msra.mxu0 %v542
      %579 = vmatprep.subr.mxu0 0.0
      %580 = vmatpush1.msra.mxu0 0.0
      %581 = vmatprep.subr.mxu0 0.0
      %582 = vmatpush1.msra.mxu0 0.0
      %583 = vmatprep.subr.mxu0 0.0
      %584 = vmatpush1.msra.mxu0 0.0
      %585 = vmatprep.subr.mxu0 0.0
      %586 = vmatpush1.msra.mxu0 0.0
      %587 = vmatprep.subr.mxu0 0.0
      %588 = vmatpush1.msra.mxu0 0.0
      %589 = vmatprep.subr.mxu0 0.0
      %590 = vmatpush1.msra.mxu0 0.0
      %591 = vmatprep.subr.mxu0 0.0
      %592 = vmatpush1.msra.mxu0 0.0
      %593 = vmatprep.subr.mxu0 0.0
      %594 = vmatpush1.msra.mxu0 0.0
      %595 = vmatprep.subr.mxu0 0.0
      %596 = vmatpush1.msra.mxu0 0.0
      %597 = vmatprep.subr.mxu0 0.0
      %598 = vmatpush1.msra.mxu0 0.0
      %599 = vmatprep.subr.mxu0 0.0
      %600 = vmatpush1.msra.mxu0 0.0
      %601 = vmatprep.subr.mxu0 0.0
      %602 = vmatpush1.msra.mxu0 0.0
      %603 = vmatprep.subr.mxu0 0.0
      %604 = vmatpush1.msra.mxu0 0.0
      %605 = vmatprep.subr.mxu0 0.0
      %606 = vmatpush1.msra.mxu0 0.0
      %607 = vmatprep.subr.mxu0 0.0
      %608 = vmatpush1.msra.mxu0 0.0
      %609 = vmatprep.subr.mxu0 0.0
      %610 = vmatpush1.msra.mxu0 0.0
      %611 = vmatprep.mubr.f32.mxu0 0.0
      %612 = vmatmul.mubr.f32.gmra.mrb[0].mxu0 %v508
      %v613 = vpop.f32.mrb[0].mxu0
      %v614 = vadd.f32 %v546, %v613
      %v615 = vpop.f32.mrb[0].mxu0
      %616 = vmatprep.mubr.f32.mxu0 0.0
      %617 = vmatmul.mubr.f32.gmra.mrb[0].mxu0 %v509
      %v618 = vpop.f32.mrb[0].mxu0
      %v619 = vadd.f32 %v546, %v618
      %v620 = vpop.f32.mrb[0].mxu0
      %621 = vmatprep.mubr.f32.mxu0 0.0
      %622 = vmatmul.mubr.f32.gmra.mrb[0].mxu0 %v510
      %v623 = vpop.f32.mrb[0].mxu0
      %v624 = vadd.f32 %v546, %v623
      %v625 = vpop.f32.mrb[0].mxu0
      %626 = vmatprep.mubr.f32.mxu0 0.0
      %627 = vmatmul.mubr.f32.gmra.mrb[0].mxu0 %v511
      %v628 = vpop.f32.mrb[0].mxu0
      %v629 = vadd.f32 %v546, %v628
      %v630 = vpop.f32.mrb[0].mxu0
      %631 = vmatprep.mubr.f32.mxu0 0.0
      %632 = vmatmul.mubr.f32.gmra.mrb[0].mxu0 %v512
      %v633 = vpop.f32.mrb[0].mxu0
      %v634 = vadd.f32 %v546, %v633
      %v635 = vpop.f32.mrb[0].mxu0
      %636 = vmatprep.mubr.f32.mxu0 0.0
      %637 = vmatmul.mubr.f32.gmra.mrb[0].mxu0 %v513
      %v638 = vpop.f32.mrb[0].mxu0
      %v639 = vadd.f32 %v546, %v638
      %v640 = vpop.f32.mrb[0].mxu0
      %641 = vmatprep.mubr.f32.mxu0 0.0
      %642 = vmatmul.mubr.f32.gmra.mrb[0].mxu0 %v514
      %v643 = vpop.f32.mrb[0].mxu0
      %v644 = vadd.f32 %v546, %v643
      %v645 = vpop.f32.mrb[0].mxu0
      %646 = vmatprep.mubr.f32.mxu0 0.0
      %647 = vmatmul.mubr.f32.gmra.mrb[0].mxu0 %v515
      %v648 = vpop.f32.mrb[0].mxu0
      %v649 = vadd.f32 %v546, %v648
      %v650 = vpop.f32.mrb[0].mxu0
      %651 = vmatprep.mubr.f32.mxu0 0.0
      %652 = vmatmul.mubr.f32.gmra.mrb[0].mxu0 %v516
      %v653 = vpop.f32.mrb[0].mxu0
      %v654 = vadd.f32 %v546, %v653
      %v655 = vpop.f32.mrb[0].mxu0
      %656 = vmatprep.mubr.f32.mxu0 0.0
      %657 = vmatmul.mubr.f32.gmra.mrb[0].mxu0 %v517
      %v658 = vpop.f32.mrb[0].mxu0
      %v659 = vadd.f32 %v546, %v658
      %v660 = vpop.f32.mrb[0].mxu0
      %661 = vmatprep.mubr.f32.mxu0 0.0
      %662 = vmatmul.mubr.f32.gmra.mrb[0].mxu0 %v518
      %v663 = vpop.f32.mrb[0].mxu0
      %v664 = vadd.f32 %v546, %v663
      %v665 = vpop.f32.mrb[0].mxu0
      %666 = vmatprep.mubr.f32.mxu0 0.0
      %667 = vmatmul.mubr.f32.gmra.mrb[0].mxu0 %v519
      %v668 = vpop.f32.mrb[0].mxu0
      %v669 = vadd.f32 %v546, %v668
      %v670 = vpop.f32.mrb[0].mxu0
      %671 = vmatprep.mubr.f32.mxu0 0.0
      %672 = vmatmul.mubr.f32.gmra.mrb[0].mxu0 %v520
      %v673 = vpop.f32.mrb[0].mxu0
      %v674 = vadd.f32 %v546, %v673
      %v675 = vpop.f32.mrb[0].mxu0
      %676 = vmatprep.mubr.f32.mxu0 0.0
      %677 = vmatmul.mubr.f32.gmra.mrb[0].mxu0 %v521
      %v678 = vpop.f32.mrb[0].mxu0
      %v679 = vadd.f32 %v546, %v678
      %v680 = vpop.f32.mrb[0].mxu0
      %681 = vmatprep.mubr.f32.mxu0 0.0
      %682 = vmatmul.mubr.f32.gmra.mrb[0].mxu0 %v522
      %v683 = vpop.f32.mrb[0].mxu0
      %v684 = vadd.f32 %v546, %v683
      %v685 = vpop.f32.mrb[0].mxu0
      %686 = vmatprep.mubr.f32.mxu0 0.0
      %687 = vmatmul.mubr.f32.gmra.mrb[0].mxu0 %v523
      %v688 = vpop.f32.mrb[0].mxu0
      %v689 = vadd.f32 %v546, %v688
      %v690 = vpop.f32.mrb[0].mxu0
      %691 = vmatprep.mubr.f32.mxu0 0.0
      %692 = vmatmul.mubr.f32.gmra.mrb[0].mxu0 %v524
      %v693 = vpop.f32.mrb[0].mxu0
      %v694 = vadd.f32 %v546, %v693
      %v695 = vpop.f32.mrb[0].mxu0
      %696 = vmatprep.mubr.f32.mxu0 0.0
      %697 = vmatmul.mubr.f32.gmra.mrb[0].mxu0 %v525
      %v698 = vpop.f32.mrb[0].mxu0
      %v699 = vadd.f32 %v546, %v698
      %v700 = vpop.f32.mrb[0].mxu0
      %701 = vmatprep.mubr.f32.mxu0 0.0
      %702 = vmatmul.mubr.f32.gmra.mrb[0].mxu0 %v526
      %v703 = vpop.f32.mrb[0].mxu0
      %v704 = vadd.f32 %v546, %v703
      %v705 = vpop.f32.mrb[0].mxu0
      %706 = vdwg.mxu0
      %v707 = vtanh.pop %v614
      %v708 = vtanh.pop %v619
      %v709 = vtanh.pop %v624
      %v710 = vtanh.pop %v629
      %v711 = vtanh.pop %v634
      %v712 = vtanh.pop %v639
      %v713 = vtanh.pop %v644
      %v714 = vtanh.pop %v649
      %v715 = vtanh.pop %v654
      %v716 = vtanh.pop %v659
      %v717 = vtanh.pop %v664
      %v718 = vtanh.pop %v669
      %v719 = vtanh.pop %v674
      %v720 = vtanh.pop %v679
      %v721 = vtanh.pop %v684
      %v722 = vtanh.pop %v689
      %v723 = vtanh.pop %v694
      %v724 = vtanh.pop %v699
      %v725 = vtanh.pop %v704
      %s726 = scalar_lea.vmem %s2, 128
      %v727 = vld [vmem:[%s726] sm:$0xff]
      %v728 = vld [vmem:[%s726 + $0x8] sm:$0xff]
      %v729 = vld [vmem:[%s726 + $0x10] sm:$0xff]
      %v730 = vld [vmem:[%s726 + $0x18] sm:$0xff]
      %v731 = vld [vmem:[%s726 + $0x20] sm:$0xff]
      %v732 = vld [vmem:[%s726 + $0x28] sm:$0xff]
      %v733 = vld [vmem:[%s726 + $0x30] sm:$0xff]
      %v734 = vld [vmem:[%s726 + $0x38] sm:$0xff]
      %v735 = vld [vmem:[%s726 + $0x40] sm:$0xff]
      %v736 = vld [vmem:[%s726 + $0x48] sm:$0xff]
      %v737 = vld [vmem:[%s726 + $0x50] sm:$0xff]
      %v738 = vld [vmem:[%s726 + $0x58] sm:$0xff]
      %v739 = vld [vmem:[%s726 + $0x60] sm:$0xff]
      %v740 = vld [vmem:[%s726 + $0x68] sm:$0xff]
      %v741 = vld [vmem:[%s726 + $0x70] sm:$0xff]
      %v742 = vld [vmem:[%s726 + $0x78] sm:$0xff]
      %v743 = vlaneseq
      %v744 = vshrl.u32 %v743, 7
      %v745 = vsub.s32 2, %v744
      %v746 = vrot.slane %v248, %v745
      %747 = vmatprep.subr.mxu0 0.0
      %748 = vmatpush1.msra.mxu0 %v727
      %749 = vmatprep.subr.mxu0 0.0
      %750 = vmatpush1.msra.mxu0 %v728
      %751 = vmatprep.subr.mxu0 0.0
      %752 = vmatpush1.msra.mxu0 %v729
      %753 = vmatprep.subr.mxu0 0.0
      %754 = vmatpush1.msra.mxu0 %v730
      %755 = vmatprep.subr.mxu0 0.0
      %756 = vmatpush1.msra.mxu0 %v731
      %757 = vmatprep.subr.mxu0 0.0
      %758 = vmatpush1.msra.mxu0 %v732
      %759 = vmatprep.subr.mxu0 0.0
      %760 = vmatpush1.msra.mxu0 %v733
      %761 = vmatprep.subr.mxu0 0.0
      %762 = vmatpush1.msra.mxu0 %v734
      %763 = vmatprep.subr.mxu0 0.0
      %764 = vmatpush1.msra.mxu0 %v735
      %765 = vmatprep.subr.mxu0 0.0
      %766 = vmatpush1.msra.mxu0 %v736
      %767 = vmatprep.subr.mxu0 0.0
      %768 = vmatpush1.msra.mxu0 %v737
      %769 = vmatprep.subr.mxu0 0.0
      %770 = vmatpush1.msra.mxu0 %v738
      %771 = vmatprep.subr.mxu0 0.0
      %772 = vmatpush1.msra.mxu0 %v739
      %773 = vmatprep.subr.mxu0 0.0
      %774 = vmatpush1.msra.mxu0 %v740
      %775 = vmatprep.subr.mxu0 0.0
      %776 = vmatpush1.msra.mxu0 %v741
      %777 = vmatprep.subr.mxu0 0.0
      %778 = vmatpush1.msra.mxu0 %v742
      %779 = vmatprep.subr.mxu0 0.0
      %780 = vmatpush1.msra.mxu0 0.0
      %781 = vmatprep.subr.mxu0 0.0
      %782 = vmatpush1.msra.mxu0 0.0
      %783 = vmatprep.subr.mxu0 0.0
      %784 = vmatpush1.msra.mxu0 0.0
      %785 = vmatprep.subr.mxu0 0.0
      %786 = vmatpush1.msra.mxu0 0.0
      %787 = vmatprep.subr.mxu0 0.0
      %788 = vmatpush1.msra.mxu0 0.0
      %789 = vmatprep.subr.mxu0 0.0
      %790 = vmatpush1.msra.mxu0 0.0
      %791 = vmatprep.subr.mxu0 0.0
      %792 = vmatpush1.msra.mxu0 0.0
      %793 = vmatprep.subr.mxu0 0.0
      %794 = vmatpush1.msra.mxu0 0.0
      %795 = vmatprep.subr.mxu0 0.0
      %796 = vmatpush1.msra.mxu0 0.0
      %797 = vmatprep.subr.mxu0 0.0
      %798 = vmatpush1.msra.mxu0 0.0
      %799 = vmatprep.subr.mxu0 0.0
      %800 = vmatpush1.msra.mxu0 0.0
      %801 = vmatprep.subr.mxu0 0.0
      %802 = vmatpush1.msra.mxu0 0.0
      %803 = vmatprep.subr.mxu0 0.0
      %804 = vmatpush1.msra.mxu0 0.0
      %805 = vmatprep.subr.mxu0 0.0
      %806 = vmatpush1.msra.mxu0 0.0
      %807 = vmatprep.subr.mxu0 0.0
      %808 = vmatpush1.msra.mxu0 0.0
      %809 = vmatprep.subr.mxu0 0.0
      %810 = vmatpush1.msra.mxu0 0.0
      %811 = vmatprep.mubr.f32.mxu0 0.0
      %812 = vmatmul.mubr.f32.gmra.mrb[0].mxu0 %v707
      %v813 = vpop.f32.mrb[0].mxu0
      %v814 = vadd.f32 %v746, %v813
      %v815 = vpop.f32.mrb[0].mxu0
      %816 = vmatprep.mubr.f32.mxu0 0.0
      %817 = vmatmul.mubr.f32.gmra.mrb[0].mxu0 %v708
      %v818 = vpop.f32.mrb[0].mxu0
      %v819 = vadd.f32 %v746, %v818
      %v820 = vpop.f32.mrb[0].mxu0
      %821 = vmatprep.mubr.f32.mxu0 0.0
      %822 = vmatmul.mubr.f32.gmra.mrb[0].mxu0 %v709
      %v823 = vpop.f32.mrb[0].mxu0
      %v824 = vadd.f32 %v746, %v823
      %v825 = vpop.f32.mrb[0].mxu0
      %826 = vmatprep.mubr.f32.mxu0 0.0
      %827 = vmatmul.mubr.f32.gmra.mrb[0].mxu0 %v710
      %v828 = vpop.f32.mrb[0].mxu0
      %v829 = vadd.f32 %v746, %v828
      %v830 = vpop.f32.mrb[0].mxu0
      %831 = vmatprep.mubr.f32.mxu0 0.0
      %832 = vmatmul.mubr.f32.gmra.mrb[0].mxu0 %v711
      %v833 = vpop.f32.mrb[0].mxu0
      %v834 = vadd.f32 %v746, %v833
      %v835 = vpop.f32.mrb[0].mxu0
      %836 = vmatprep.mubr.f32.mxu0 0.0
      %837 = vmatmul.mubr.f32.gmra.mrb[0].mxu0 %v712
      %v838 = vpop.f32.mrb[0].mxu0
      %v839 = vadd.f32 %v746, %v838
      %v840 = vpop.f32.mrb[0].mxu0
      %841 = vmatprep.mubr.f32.mxu0 0.0
      %842 = vmatmul.mubr.f32.gmra.mrb[0].mxu0 %v713
      %v843 = vpop.f32.mrb[0].mxu0
      %v844 = vadd.f32 %v746, %v843
      %v845 = vpop.f32.mrb[0].mxu0
      %846 = vmatprep.mubr.f32.mxu0 0.0
      %847 = vmatmul.mubr.f32.gmra.mrb[0].mxu0 %v714
      %v848 = vpop.f32.mrb[0].mxu0
      %v849 = vadd.f32 %v746, %v848
      %v850 = vpop.f32.mrb[0].mxu0
      %851 = vmatprep.mubr.f32.mxu0 0.0
      %852 = vmatmul.mubr.f32.gmra.mrb[0].mxu0 %v715
      %v853 = vpop.f32.mrb[0].mxu0
      %v854 = vadd.f32 %v746, %v853
      %v855 = vpop.f32.mrb[0].mxu0
      %856 = vmatprep.mubr.f32.mxu0 0.0
      %857 = vmatmul.mubr.f32.gmra.mrb[0].mxu0 %v716
      %v858 = vpop.f32.mrb[0].mxu0
      %v859 = vadd.f32 %v746, %v858
      %v860 = vpop.f32.mrb[0].mxu0
      %861 = vmatprep.mubr.f32.mxu0 0.0
      %862 = vmatmul.mubr.f32.gmra.mrb[0].mxu0 %v717
      %v863 = vpop.f32.mrb[0].mxu0
      %v864 = vadd.f32 %v746, %v863
      %v865 = vpop.f32.mrb[0].mxu0
      %866 = vmatprep.mubr.f32.mxu0 0.0
      %867 = vmatmul.mubr.f32.gmra.mrb[0].mxu0 %v718
      %v868 = vpop.f32.mrb[0].mxu0
      %v869 = vadd.f32 %v746, %v868
      %v870 = vpop.f32.mrb[0].mxu0
      %871 = vmatprep.mubr.f32.mxu0 0.0
      %872 = vmatmul.mubr.f32.gmra.mrb[0].mxu0 %v719
      %v873 = vpop.f32.mrb[0].mxu0
      %v874 = vadd.f32 %v746, %v873
      %v875 = vpop.f32.mrb[0].mxu0
      %876 = vmatprep.mubr.f32.mxu0 0.0
      %877 = vmatmul.mubr.f32.gmra.mrb[0].mxu0 %v720
      %v878 = vpop.f32.mrb[0].mxu0
      %v879 = vadd.f32 %v746, %v878
      %v880 = vpop.f32.mrb[0].mxu0
      %881 = vmatprep.mubr.f32.mxu0 0.0
      %882 = vmatmul.mubr.f32.gmra.mrb[0].mxu0 %v721
      %v883 = vpop.f32.mrb[0].mxu0
      %v884 = vadd.f32 %v746, %v883
      %v885 = vpop.f32.mrb[0].mxu0
      %886 = vmatprep.mubr.f32.mxu0 0.0
      %887 = vmatmul.mubr.f32.gmra.mrb[0].mxu0 %v722
      %v888 = vpop.f32.mrb[0].mxu0
      %v889 = vadd.f32 %v746, %v888
      %v890 = vpop.f32.mrb[0].mxu0
      %891 = vmatprep.mubr.f32.mxu0 0.0
      %892 = vmatmul.mubr.f32.gmra.mrb[0].mxu0 %v723
      %v893 = vpop.f32.mrb[0].mxu0
      %v894 = vadd.f32 %v746, %v893
      %v895 = vpop.f32.mrb[0].mxu0
      %896 = vmatprep.mubr.f32.mxu0 0.0
      %897 = vmatmul.mubr.f32.gmra.mrb[0].mxu0 %v724
      %v898 = vpop.f32.mrb[0].mxu0
      %v899 = vadd.f32 %v746, %v898
      %v900 = vpop.f32.mrb[0].mxu0
      %901 = vmatprep.mubr.f32.mxu0 0.0
      %902 = vmatmul.mubr.f32.gmra.mrb[0].mxu0 %v725
      %v903 = vpop.f32.mrb[0].mxu0
      %v904 = vadd.f32 %v746, %v903
      %v905 = vpop.f32.mrb[0].mxu0
      %906 = vdwg.mxu0
      %v907 = vtanh.pop %v814
      %v908 = vtanh.pop %v819
      %v909 = vtanh.pop %v824
      %v910 = vtanh.pop %v829
      %v911 = vtanh.pop %v834
      %v912 = vtanh.pop %v839
      %v913 = vtanh.pop %v844
      %v914 = vtanh.pop %v849
      %v915 = vtanh.pop %v854
      %v916 = vtanh.pop %v859
      %v917 = vtanh.pop %v864
      %v918 = vtanh.pop %v869
      %v919 = vtanh.pop %v874
      %v920 = vtanh.pop %v879
      %v921 = vtanh.pop %v884
      %v922 = vtanh.pop %v889
      %v923 = vtanh.pop %v894
      %v924 = vtanh.pop %v899
      %v925 = vtanh.pop %v904
      %s926 = scalar_lea.vmem %s2, 256
      %v927 = vld [vmem:[%s926] sm:$0xff]
      %v928 = vld [vmem:[%s926 + $0x8] sm:$0xff]
      %v929 = vld [vmem:[%s926 + $0x10] sm:$0xff]
      %v930 = vld [vmem:[%s926 + $0x18] sm:$0xff]
      %v931 = vld [vmem:[%s926 + $0x20] sm:$0xff]
      %v932 = vld [vmem:[%s926 + $0x28] sm:$0xff]
      %v933 = vld [vmem:[%s926 + $0x30] sm:$0xff]
      %v934 = vld [vmem:[%s926 + $0x38] sm:$0xff]
      %v935 = vld [vmem:[%s926 + $0x40] sm:$0xff]
      %v936 = vld [vmem:[%s926 + $0x48] sm:$0xff]
      %v937 = vld [vmem:[%s926 + $0x50] sm:$0xff]
      %v938 = vld [vmem:[%s926 + $0x58] sm:$0xff]
      %v939 = vld [vmem:[%s926 + $0x60] sm:$0xff]
      %v940 = vld [vmem:[%s926 + $0x68] sm:$0xff]
      %v941 = vld [vmem:[%s926 + $0x70] sm:$0xff]
      %v942 = vld [vmem:[%s926 + $0x78] sm:$0xff]
      %v943 = vlaneseq
      %v944 = vshrl.u32 %v943, 7
      %v945 = vsub.s32 3, %v944
      %v946 = vrot.slane %v248, %v945
      %947 = vmatprep.subr.mxu0 0.0
      %948 = vmatpush1.msra.mxu0 %v927
      %949 = vmatprep.subr.mxu0 0.0
      %950 = vmatpush1.msra.mxu0 %v928
      %951 = vmatprep.subr.mxu0 0.0
      %952 = vmatpush1.msra.mxu0 %v929
      %953 = vmatprep.subr.mxu0 0.0
      %954 = vmatpush1.msra.mxu0 %v930
      %955 = vmatprep.subr.mxu0 0.0
      %956 = vmatpush1.msra.mxu0 %v931
      %957 = vmatprep.subr.mxu0 0.0
      %958 = vmatpush1.msra.mxu0 %v932
      %959 = vmatprep.subr.mxu0 0.0
      %960 = vmatpush1.msra.mxu0 %v933
      %961 = vmatprep.subr.mxu0 0.0
      %962 = vmatpush1.msra.mxu0 %v934
      %963 = vmatprep.subr.mxu0 0.0
      %964 = vmatpush1.msra.mxu0 %v935
      %965 = vmatprep.subr.mxu0 0.0
      %966 = vmatpush1.msra.mxu0 %v936
      %967 = vmatprep.subr.mxu0 0.0
      %968 = vmatpush1.msra.mxu0 %v937
      %969 = vmatprep.subr.mxu0 0.0
      %970 = vmatpush1.msra.mxu0 %v938
      %971 = vmatprep.subr.mxu0 0.0
      %972 = vmatpush1.msra.mxu0 %v939
      %973 = vmatprep.subr.mxu0 0.0
      %974 = vmatpush1.msra.mxu0 %v940
      %975 = vmatprep.subr.mxu0 0.0
      %976 = vmatpush1.msra.mxu0 %v941
      %977 = vmatprep.subr.mxu0 0.0
      %978 = vmatpush1.msra.mxu0 %v942
      %979 = vmatprep.subr.mxu0 0.0
      %980 = vmatpush1.msra.mxu0 0.0
      %981 = vmatprep.subr.mxu0 0.0
      %982 = vmatpush1.msra.mxu0 0.0
      %983 = vmatprep.subr.mxu0 0.0
      %984 = vmatpush1.msra.mxu0 0.0
      %985 = vmatprep.subr.mxu0 0.0
      %986 = vmatpush1.msra.mxu0 0.0
      %987 = vmatprep.subr.mxu0 0.0
      %988 = vmatpush1.msra.mxu0 0.0
      %989 = vmatprep.subr.mxu0 0.0
      %990 = vmatpush1.msra.mxu0 0.0
      %991 = vmatprep.subr.mxu0 0.0
      %992 = vmatpush1.msra.mxu0 0.0
      %993 = vmatprep.subr.mxu0 0.0
      %994 = vmatpush1.msra.mxu0 0.0
      %995 = vmatprep.subr.mxu0 0.0
      %996 = vmatpush1.msra.mxu0 0.0
      %997 = vmatprep.subr.mxu0 0.0
      %998 = vmatpush1.msra.mxu0 0.0
      %999 = vmatprep.subr.mxu0 0.0
      %1000 = vmatpush1.msra.mxu0 0.0
      %1001 = vmatprep.subr.mxu0 0.0
      %1002 = vmatpush1.msra.mxu0 0.0
      %1003 = vmatprep.subr.mxu0 0.0
      %1004 = vmatpush1.msra.mxu0 0.0
      %1005 = vmatprep.subr.mxu0 0.0
      %1006 = vmatpush1.msra.mxu0 0.0
      %1007 = vmatprep.subr.mxu0 0.0
      %1008 = vmatpush1.msra.mxu0 0.0
      %1009 = vmatprep.subr.mxu0 0.0
      %1010 = vmatpush1.msra.mxu0 0.0
      %1011 = vmatprep.mubr.f32.mxu0 0.0
      %1012 = vmatmul.mubr.f32.gmra.mrb[0].mxu0 %v907
      %v1013 = vpop.f32.mrb[0].mxu0
      %v1014 = vadd.f32 %v946, %v1013
      %v1015 = vpop.f32.mrb[0].mxu0
      %1016 = vmatprep.mubr.f32.mxu0 0.0
      %1017 = vmatmul.mubr.f32.gmra.mrb[0].mxu0 %v908
      %v1018 = vpop.f32.mrb[0].mxu0
      %v1019 = vadd.f32 %v946, %v1018
      %v1020 = vpop.f32.mrb[0].mxu0
      %1021 = vmatprep.mubr.f32.mxu0 0.0
      %1022 = vmatmul.mubr.f32.gmra.mrb[0].mxu0 %v909
      %v1023 = vpop.f32.mrb[0].mxu0
      %v1024 = vadd.f32 %v946, %v1023
      %v1025 = vpop.f32.mrb[0].mxu0
      %1026 = vmatprep.mubr.f32.mxu0 0.0
      %1027 = vmatmul.mubr.f32.gmra.mrb[0].mxu0 %v910
      %v1028 = vpop.f32.mrb[0].mxu0
      %v1029 = vadd.f32 %v946, %v1028
      %v1030 = vpop.f32.mrb[0].mxu0
      %1031 = vmatprep.mubr.f32.mxu0 0.0
      %1032 = vmatmul.mubr.f32.gmra.mrb[0].mxu0 %v911
      %v1033 = vpop.f32.mrb[0].mxu0
      %v1034 = vadd.f32 %v946, %v1033
      %v1035 = vpop.f32.mrb[0].mxu0
      %1036 = vmatprep.mubr.f32.mxu0 0.0
      %1037 = vmatmul.mubr.f32.gmra.mrb[0].mxu0 %v912
      %v1038 = vpop.f32.mrb[0].mxu0
      %v1039 = vadd.f32 %v946, %v1038
      %v1040 = vpop.f32.mrb[0].mxu0
      %1041 = vmatprep.mubr.f32.mxu0 0.0
      %1042 = vmatmul.mubr.f32.gmra.mrb[0].mxu0 %v913
      %v1043 = vpop.f32.mrb[0].mxu0
      %v1044 = vadd.f32 %v946, %v1043
      %v1045 = vpop.f32.mrb[0].mxu0
      %1046 = vmatprep.mubr.f32.mxu0 0.0
      %1047 = vmatmul.mubr.f32.gmra.mrb[0].mxu0 %v914
      %v1048 = vpop.f32.mrb[0].mxu0
      %v1049 = vadd.f32 %v946, %v1048
      %v1050 = vpop.f32.mrb[0].mxu0
      %1051 = vmatprep.mubr.f32.mxu0 0.0
      %1052 = vmatmul.mubr.f32.gmra.mrb[0].mxu0 %v915
      %v1053 = vpop.f32.mrb[0].mxu0
      %v1054 = vadd.f32 %v946, %v1053
      %v1055 = vpop.f32.mrb[0].mxu0
      %1056 = vmatprep.mubr.f32.mxu0 0.0
      %1057 = vmatmul.mubr.f32.gmra.mrb[0].mxu0 %v916
      %v1058 = vpop.f32.mrb[0].mxu0
      %v1059 = vadd.f32 %v946, %v1058
      %v1060 = vpop.f32.mrb[0].mxu0
      %1061 = vmatprep.mubr.f32.mxu0 0.0
      %1062 = vmatmul.mubr.f32.gmra.mrb[0].mxu0 %v917
      %v1063 = vpop.f32.mrb[0].mxu0
      %v1064 = vadd.f32 %v946, %v1063
      %v1065 = vpop.f32.mrb[0].mxu0
      %1066 = vmatprep.mubr.f32.mxu0 0.0
      %1067 = vmatmul.mubr.f32.gmra.mrb[0].mxu0 %v918
      %v1068 = vpop.f32.mrb[0].mxu0
      %v1069 = vadd.f32 %v946, %v1068
      %v1070 = vpop.f32.mrb[0].mxu0
      %1071 = vmatprep.mubr.f32.mxu0 0.0
      %1072 = vmatmul.mubr.f32.gmra.mrb[0].mxu0 %v919
      %v1073 = vpop.f32.mrb[0].mxu0
      %v1074 = vadd.f32 %v946, %v1073
      %v1075 = vpop.f32.mrb[0].mxu0
      %1076 = vmatprep.mubr.f32.mxu0 0.0
      %1077 = vmatmul.mubr.f32.gmra.mrb[0].mxu0 %v920
      %v1078 = vpop.f32.mrb[0].mxu0
      %v1079 = vadd.f32 %v946, %v1078
      %v1080 = vpop.f32.mrb[0].mxu0
      %1081 = vmatprep.mubr.f32.mxu0 0.0
      %1082 = vmatmul.mubr.f32.gmra.mrb[0].mxu0 %v921
      %v1083 = vpop.f32.mrb[0].mxu0
      %v1084 = vadd.f32 %v946, %v1083
      %v1085 = vpop.f32.mrb[0].mxu0
      %1086 = vmatprep.mubr.f32.mxu0 0.0
      %1087 = vmatmul.mubr.f32.gmra.mrb[0].mxu0 %v922
      %v1088 = vpop.f32.mrb[0].mxu0
      %v1089 = vadd.f32 %v946, %v1088
      %v1090 = vpop.f32.mrb[0].mxu0
      %1091 = vmatprep.mubr.f32.mxu0 0.0
      %1092 = vmatmul.mubr.f32.gmra.mrb[0].mxu0 %v923
      %v1093 = vpop.f32.mrb[0].mxu0
      %v1094 = vadd.f32 %v946, %v1093
      %v1095 = vpop.f32.mrb[0].mxu0
      %1096 = vmatprep.mubr.f32.mxu0 0.0
      %1097 = vmatmul.mubr.f32.gmra.mrb[0].mxu0 %v924
      %v1098 = vpop.f32.mrb[0].mxu0
      %v1099 = vadd.f32 %v946, %v1098
      %v1100 = vpop.f32.mrb[0].mxu0
      %1101 = vmatprep.mubr.f32.mxu0 0.0
      %1102 = vmatmul.mubr.f32.gmra.mrb[0].mxu0 %v925
      %v1103 = vpop.f32.mrb[0].mxu0
      %v1104 = vadd.f32 %v946, %v1103
      %v1105 = vpop.f32.mrb[0].mxu0
      %1106 = vdwg.mxu0
      %v1107 = vtanh.pop %v1014
      %v1108 = vtanh.pop %v1019
      %v1109 = vtanh.pop %v1024
      %v1110 = vtanh.pop %v1029
      %v1111 = vtanh.pop %v1034
      %v1112 = vtanh.pop %v1039
      %v1113 = vtanh.pop %v1044
      %v1114 = vtanh.pop %v1049
      %v1115 = vtanh.pop %v1054
      %v1116 = vtanh.pop %v1059
      %v1117 = vtanh.pop %v1064
      %v1118 = vtanh.pop %v1069
      %v1119 = vtanh.pop %v1074
      %v1120 = vtanh.pop %v1079
      %v1121 = vtanh.pop %v1084
      %v1122 = vtanh.pop %v1089
      %v1123 = vtanh.pop %v1094
      %v1124 = vtanh.pop %v1099
      %v1125 = vtanh.pop %v1104
      %s1126 = scalar_lea.vmem %s2, 384
      %v1127 = vld [vmem:[%s1126] sm:$0xff]
      %v1128 = vld [vmem:[%s1126 + $0x8] sm:$0xff]
      %v1129 = vld [vmem:[%s1126 + $0x10] sm:$0xff]
      %v1130 = vld [vmem:[%s1126 + $0x18] sm:$0xff]
      %v1131 = vld [vmem:[%s1126 + $0x20] sm:$0xff]
      %v1132 = vld [vmem:[%s1126 + $0x28] sm:$0xff]
      %v1133 = vld [vmem:[%s1126 + $0x30] sm:$0xff]
      %v1134 = vld [vmem:[%s1126 + $0x38] sm:$0xff]
      %v1135 = vld [vmem:[%s1126 + $0x40] sm:$0xff]
      %v1136 = vld [vmem:[%s1126 + $0x48] sm:$0xff]
      %v1137 = vld [vmem:[%s1126 + $0x50] sm:$0xff]
      %v1138 = vld [vmem:[%s1126 + $0x58] sm:$0xff]
      %v1139 = vld [vmem:[%s1126 + $0x60] sm:$0xff]
      %v1140 = vld [vmem:[%s1126 + $0x68] sm:$0xff]
      %v1141 = vld [vmem:[%s1126 + $0x70] sm:$0xff]
      %v1142 = vld [vmem:[%s1126 + $0x78] sm:$0xff]
      %v1143 = vlaneseq
      %v1144 = vshrl.u32 %v1143, 7
      %v1145 = vsub.s32 4, %v1144
      %v1146 = vrot.slane %v248, %v1145
      %1147 = vmatprep.subr.mxu0 0.0
      %1148 = vmatpush1.msra.mxu0 %v1127
      %1149 = vmatprep.subr.mxu0 0.0
      %1150 = vmatpush1.msra.mxu0 %v1128
      %1151 = vmatprep.subr.mxu0 0.0
      %1152 = vmatpush1.msra.mxu0 %v1129
      %1153 = vmatprep.subr.mxu0 0.0
      %1154 = vmatpush1.msra.mxu0 %v1130
      %1155 = vmatprep.subr.mxu0 0.0
      %1156 = vmatpush1.msra.mxu0 %v1131
      %1157 = vmatprep.subr.mxu0 0.0
      %1158 = vmatpush1.msra.mxu0 %v1132
      %1159 = vmatprep.subr.mxu0 0.0
      %1160 = vmatpush1.msra.mxu0 %v1133
      %1161 = vmatprep.subr.mxu0 0.0
      %1162 = vmatpush1.msra.mxu0 %v1134
      %1163 = vmatprep.subr.mxu0 0.0
      %1164 = vmatpush1.msra.mxu0 %v1135
      %1165 = vmatprep.subr.mxu0 0.0
      %1166 = vmatpush1.msra.mxu0 %v1136
      %1167 = vmatprep.subr.mxu0 0.0
      %1168 = vmatpush1.msra.mxu0 %v1137
      %1169 = vmatprep.subr.mxu0 0.0
      %1170 = vmatpush1.msra.mxu0 %v1138
      %1171 = vmatprep.subr.mxu0 0.0
      %1172 = vmatpush1.msra.mxu0 %v1139
      %1173 = vmatprep.subr.mxu0 0.0
      %1174 = vmatpush1.msra.mxu0 %v1140
      %1175 = vmatprep.subr.mxu0 0.0
      %1176 = vmatpush1.msra.mxu0 %v1141
      %1177 = vmatprep.subr.mxu0 0.0
      %1178 = vmatpush1.msra.mxu0 %v1142
      %1179 = vmatprep.subr.mxu0 0.0
      %1180 = vmatpush1.msra.mxu0 0.0
      %1181 = vmatprep.subr.mxu0 0.0
      %1182 = vmatpush1.msra.mxu0 0.0
      %1183 = vmatprep.subr.mxu0 0.0
      %1184 = vmatpush1.msra.mxu0 0.0
      %1185 = vmatprep.subr.mxu0 0.0
      %1186 = vmatpush1.msra.mxu0 0.0
      %1187 = vmatprep.subr.mxu0 0.0
      %1188 = vmatpush1.msra.mxu0 0.0
      %1189 = vmatprep.subr.mxu0 0.0
      %1190 = vmatpush1.msra.mxu0 0.0
      %1191 = vmatprep.subr.mxu0 0.0
      %1192 = vmatpush1.msra.mxu0 0.0
      %1193 = vmatprep.subr.mxu0 0.0
      %1194 = vmatpush1.msra.mxu0 0.0
      %1195 = vmatprep.subr.mxu0 0.0
      %1196 = vmatpush1.msra.mxu0 0.0
      %1197 = vmatprep.subr.mxu0 0.0
      %1198 = vmatpush1.msra.mxu0 0.0
      %1199 = vmatprep.subr.mxu0 0.0
      %1200 = vmatpush1.msra.mxu0 0.0
      %1201 = vmatprep.subr.mxu0 0.0
      %1202 = vmatpush1.msra.mxu0 0.0
      %1203 = vmatprep.subr.mxu0 0.0
      %1204 = vmatpush1.msra.mxu0 0.0
      %1205 = vmatprep.subr.mxu0 0.0
      %1206 = vmatpush1.msra.mxu0 0.0
      %1207 = vmatprep.subr.mxu0 0.0
      %1208 = vmatpush1.msra.mxu0 0.0
      %1209 = vmatprep.subr.mxu0 0.0
      %1210 = vmatpush1.msra.mxu0 0.0
      %1211 = vmatprep.mubr.f32.mxu0 0.0
      %1212 = vmatmul.mubr.f32.gmra.mrb[0].mxu0 %v1107
      %v1213 = vpop.f32.mrb[0].mxu0
      %v1214 = vadd.f32 %v1146, %v1213
      %v1215 = vpop.f32.mrb[0].mxu0
      %1216 = vmatprep.mubr.f32.mxu0 0.0
      %1217 = vmatmul.mubr.f32.gmra.mrb[0].mxu0 %v1108
      %v1218 = vpop.f32.mrb[0].mxu0
      %v1219 = vadd.f32 %v1146, %v1218
      %v1220 = vpop.f32.mrb[0].mxu0
      %1221 = vmatprep.mubr.f32.mxu0 0.0
      %1222 = vmatmul.mubr.f32.gmra.mrb[0].mxu0 %v1109
      %v1223 = vpop.f32.mrb[0].mxu0
      %v1224 = vadd.f32 %v1146, %v1223
      %v1225 = vpop.f32.mrb[0].mxu0
      %1226 = vmatprep.mubr.f32.mxu0 0.0
      %1227 = vmatmul.mubr.f32.gmra.mrb[0].mxu0 %v1110
      %v1228 = vpop.f32.mrb[0].mxu0
      %v1229 = vadd.f32 %v1146, %v1228
      %v1230 = vpop.f32.mrb[0].mxu0
      %1231 = vmatprep.mubr.f32.mxu0 0.0
      %1232 = vmatmul.mubr.f32.gmra.mrb[0].mxu0 %v1111
      %v1233 = vpop.f32.mrb[0].mxu0
      %v1234 = vadd.f32 %v1146, %v1233
      %v1235 = vpop.f32.mrb[0].mxu0
      %1236 = vmatprep.mubr.f32.mxu0 0.0
      %1237 = vmatmul.mubr.f32.gmra.mrb[0].mxu0 %v1112
      %v1238 = vpop.f32.mrb[0].mxu0
      %v1239 = vadd.f32 %v1146, %v1238
      %v1240 = vpop.f32.mrb[0].mxu0
      %1241 = vmatprep.mubr.f32.mxu0 0.0
      %1242 = vmatmul.mubr.f32.gmra.mrb[0].mxu0 %v1113
      %v1243 = vpop.f32.mrb[0].mxu0
      %v1244 = vadd.f32 %v1146, %v1243
      %v1245 = vpop.f32.mrb[0].mxu0
      %1246 = vmatprep.mubr.f32.mxu0 0.0
      %1247 = vmatmul.mubr.f32.gmra.mrb[0].mxu0 %v1114
      %v1248 = vpop.f32.mrb[0].mxu0
      %v1249 = vadd.f32 %v1146, %v1248
      %v1250 = vpop.f32.mrb[0].mxu0
      %1251 = vmatprep.mubr.f32.mxu0 0.0
      %1252 = vmatmul.mubr.f32.gmra.mrb[0].mxu0 %v1115
      %v1253 = vpop.f32.mrb[0].mxu0
      %v1254 = vadd.f32 %v1146, %v1253
      %v1255 = vpop.f32.mrb[0].mxu0
      %1256 = vmatprep.mubr.f32.mxu0 0.0
      %1257 = vmatmul.mubr.f32.gmra.mrb[0].mxu0 %v1116
      %v1258 = vpop.f32.mrb[0].mxu0
      %v1259 = vadd.f32 %v1146, %v1258
      %v1260 = vpop.f32.mrb[0].mxu0
      %1261 = vmatprep.mubr.f32.mxu0 0.0
      %1262 = vmatmul.mubr.f32.gmra.mrb[0].mxu0 %v1117
      %v1263 = vpop.f32.mrb[0].mxu0
      %v1264 = vadd.f32 %v1146, %v1263
      %v1265 = vpop.f32.mrb[0].mxu0
      %1266 = vmatprep.mubr.f32.mxu0 0.0
      %1267 = vmatmul.mubr.f32.gmra.mrb[0].mxu0 %v1118
      %v1268 = vpop.f32.mrb[0].mxu0
      %v1269 = vadd.f32 %v1146, %v1268
      %v1270 = vpop.f32.mrb[0].mxu0
      %1271 = vmatprep.mubr.f32.mxu0 0.0
      %1272 = vmatmul.mubr.f32.gmra.mrb[0].mxu0 %v1119
      %v1273 = vpop.f32.mrb[0].mxu0
      %v1274 = vadd.f32 %v1146, %v1273
      %v1275 = vpop.f32.mrb[0].mxu0
      %1276 = vmatprep.mubr.f32.mxu0 0.0
      %1277 = vmatmul.mubr.f32.gmra.mrb[0].mxu0 %v1120
      %v1278 = vpop.f32.mrb[0].mxu0
      %v1279 = vadd.f32 %v1146, %v1278
      %v1280 = vpop.f32.mrb[0].mxu0
      %1281 = vmatprep.mubr.f32.mxu0 0.0
      %1282 = vmatmul.mubr.f32.gmra.mrb[0].mxu0 %v1121
      %v1283 = vpop.f32.mrb[0].mxu0
      %v1284 = vadd.f32 %v1146, %v1283
      %v1285 = vpop.f32.mrb[0].mxu0
      %1286 = vmatprep.mubr.f32.mxu0 0.0
      %1287 = vmatmul.mubr.f32.gmra.mrb[0].mxu0 %v1122
      %v1288 = vpop.f32.mrb[0].mxu0
      %v1289 = vadd.f32 %v1146, %v1288
      %v1290 = vpop.f32.mrb[0].mxu0
      %1291 = vmatprep.mubr.f32.mxu0 0.0
      %1292 = vmatmul.mubr.f32.gmra.mrb[0].mxu0 %v1123
      %v1293 = vpop.f32.mrb[0].mxu0
      %v1294 = vadd.f32 %v1146, %v1293
      %v1295 = vpop.f32.mrb[0].mxu0
      %1296 = vmatprep.mubr.f32.mxu0 0.0
      %1297 = vmatmul.mubr.f32.gmra.mrb[0].mxu0 %v1124
      %v1298 = vpop.f32.mrb[0].mxu0
      %v1299 = vadd.f32 %v1146, %v1298
      %v1300 = vpop.f32.mrb[0].mxu0
      %1301 = vmatprep.mubr.f32.mxu0 0.0
      %1302 = vmatmul.mubr.f32.gmra.mrb[0].mxu0 %v1125
      %v1303 = vpop.f32.mrb[0].mxu0
      %v1304 = vadd.f32 %v1146, %v1303
      %v1305 = vpop.f32.mrb[0].mxu0
      %1306 = vdwg.mxu0
      %v1307 = vtanh.pop %v1214
      %v1308 = vtanh.pop %v1219
      %v1309 = vtanh.pop %v1224
      %v1310 = vtanh.pop %v1229
      %v1311 = vtanh.pop %v1234
      %v1312 = vtanh.pop %v1239
      %v1313 = vtanh.pop %v1244
      %v1314 = vtanh.pop %v1249
      %v1315 = vtanh.pop %v1254
      %v1316 = vtanh.pop %v1259
      %v1317 = vtanh.pop %v1264
      %v1318 = vtanh.pop %v1269
      %v1319 = vtanh.pop %v1274
      %v1320 = vtanh.pop %v1279
      %v1321 = vtanh.pop %v1284
      %v1322 = vtanh.pop %v1289
      %v1323 = vtanh.pop %v1294
      %v1324 = vtanh.pop %v1299
      %v1325 = vtanh.pop %v1304
      %v1326 = vld [vmem:[%s3] sm:$0xff]
      %v1327 = vld [vmem:[%s3 + $0x8] sm:$0xff]
      %v1328 = vld [vmem:[%s3 + $0x10] sm:$0xff]
      %v1329 = vld [vmem:[%s3 + $0x18] sm:$0xff]
      %v1330 = vld [vmem:[%s3 + $0x20] sm:$0xff]
      %v1331 = vld [vmem:[%s3 + $0x28] sm:$0xff]
      %v1332 = vld [vmem:[%s3 + $0x30] sm:$0xff]
      %v1333 = vld [vmem:[%s3 + $0x38] sm:$0xff]
      %v1334 = vld [vmem:[%s3 + $0x40] sm:$0xff]
      %v1335 = vld [vmem:[%s3 + $0x48] sm:$0xff]
      %v1336 = vld [vmem:[%s3 + $0x50] sm:$0xff]
      %v1337 = vld [vmem:[%s3 + $0x58] sm:$0xff]
      %v1338 = vld [vmem:[%s3 + $0x60] sm:$0xff]
      %v1339 = vld [vmem:[%s3 + $0x68] sm:$0xff]
      %v1340 = vld [vmem:[%s3 + $0x70] sm:$0xff]
      %v1341 = vld [vmem:[%s3 + $0x78] sm:$0xff]
      %v1342 = vlaneseq
      %v1343 = vshrl.u32 %v1342, 7
      %v1344 = vsub.s32 5, %v1343
      %v1345 = vrot.slane %v248, %v1344
      %1346 = vmatprep.subr.mxu0 0.0
      %1347 = vmatpush1.msra.mxu0 %v1326
      %1348 = vmatprep.subr.mxu0 0.0
      %1349 = vmatpush1.msra.mxu0 %v1327
      %1350 = vmatprep.subr.mxu0 0.0
      %1351 = vmatpush1.msra.mxu0 %v1328
      %1352 = vmatprep.subr.mxu0 0.0
      %1353 = vmatpush1.msra.mxu0 %v1329
      %1354 = vmatprep.subr.mxu0 0.0
      %1355 = vmatpush1.msra.mxu0 %v1330
      %1356 = vmatprep.subr.mxu0 0.0
      %1357 = vmatpush1.msra.mxu0 %v1331
      %1358 = vmatprep.subr.mxu0 0.0
      %1359 = vmatpush1.msra.mxu0 %v1332
      %1360 = vmatprep.subr.mxu0 0.0
      %1361 = vmatpush1.msra.mxu0 %v1333
      %1362 = vmatprep.subr.mxu0 0.0
      %1363 = vmatpush1.msra.mxu0 %v1334
      %1364 = vmatprep.subr.mxu0 0.0
      %1365 = vmatpush1.msra.mxu0 %v1335
      %1366 = vmatprep.subr.mxu0 0.0
      %1367 = vmatpush1.msra.mxu0 %v1336
      %1368 = vmatprep.subr.mxu0 0.0
      %1369 = vmatpush1.msra.mxu0 %v1337
      %1370 = vmatprep.subr.mxu0 0.0
      %1371 = vmatpush1.msra.mxu0 %v1338
      %1372 = vmatprep.subr.mxu0 0.0
      %1373 = vmatpush1.msra.mxu0 %v1339
      %1374 = vmatprep.subr.mxu0 0.0
      %1375 = vmatpush1.msra.mxu0 %v1340
      %1376 = vmatprep.subr.mxu0 0.0
      %1377 = vmatpush1.msra.mxu0 %v1341
      %1378 = vmatprep.subr.mxu0 0.0
      %1379 = vmatpush1.msra.mxu0 0.0
      %1380 = vmatprep.subr.mxu0 0.0
      %1381 = vmatpush1.msra.mxu0 0.0
      %1382 = vmatprep.subr.mxu0 0.0
      %1383 = vmatpush1.msra.mxu0 0.0
      %1384 = vmatprep.subr.mxu0 0.0
      %1385 = vmatpush1.msra.mxu0 0.0
      %1386 = vmatprep.subr.mxu0 0.0
      %1387 = vmatpush1.msra.mxu0 0.0
      %1388 = vmatprep.subr.mxu0 0.0
      %1389 = vmatpush1.msra.mxu0 0.0
      %1390 = vmatprep.subr.mxu0 0.0
      %1391 = vmatpush1.msra.mxu0 0.0
      %1392 = vmatprep.subr.mxu0 0.0
      %1393 = vmatpush1.msra.mxu0 0.0
      %1394 = vmatprep.subr.mxu0 0.0
      %1395 = vmatpush1.msra.mxu0 0.0
      %1396 = vmatprep.subr.mxu0 0.0
      %1397 = vmatpush1.msra.mxu0 0.0
      %1398 = vmatprep.subr.mxu0 0.0
      %1399 = vmatpush1.msra.mxu0 0.0
      %1400 = vmatprep.subr.mxu0 0.0
      %1401 = vmatpush1.msra.mxu0 0.0
      %1402 = vmatprep.subr.mxu0 0.0
      %1403 = vmatpush1.msra.mxu0 0.0
      %1404 = vmatprep.subr.mxu0 0.0
      %1405 = vmatpush1.msra.mxu0 0.0
      %1406 = vmatprep.subr.mxu0 0.0
      %1407 = vmatpush1.msra.mxu0 0.0
      %1408 = vmatprep.subr.mxu0 0.0
      %1409 = vmatpush1.msra.mxu0 0.0
      %1410 = vmatprep.mubr.f32.mxu0 0.0
      %1411 = vmatmul.mubr.f32.gmra.mrb[0].mxu0 %v1307
      %v1412 = vpop.f32.mrb[0].mxu0
      %v1413 = vadd.f32 %v1345, %v1412
      %v1414 = vpop.f32.mrb[0].mxu0
      %1415 = vmatprep.mubr.f32.mxu0 0.0
      %1416 = vmatmul.mubr.f32.gmra.mrb[0].mxu0 %v1308
      %v1417 = vpop.f32.mrb[0].mxu0
      %v1418 = vadd.f32 %v1345, %v1417
      %v1419 = vpop.f32.mrb[0].mxu0
      %1420 = vmatprep.mubr.f32.mxu0 0.0
      %1421 = vmatmul.mubr.f32.gmra.mrb[0].mxu0 %v1309
      %v1422 = vpop.f32.mrb[0].mxu0
      %v1423 = vadd.f32 %v1345, %v1422
      %v1424 = vpop.f32.mrb[0].mxu0
      %1425 = vmatprep.mubr.f32.mxu0 0.0
      %1426 = vmatmul.mubr.f32.gmra.mrb[0].mxu0 %v1310
      %v1427 = vpop.f32.mrb[0].mxu0
      %v1428 = vadd.f32 %v1345, %v1427
      %v1429 = vpop.f32.mrb[0].mxu0
      %1430 = vmatprep.mubr.f32.mxu0 0.0
      %1431 = vmatmul.mubr.f32.gmra.mrb[0].mxu0 %v1311
      %v1432 = vpop.f32.mrb[0].mxu0
      %v1433 = vadd.f32 %v1345, %v1432
      %v1434 = vpop.f32.mrb[0].mxu0
      %1435 = vmatprep.mubr.f32.mxu0 0.0
      %1436 = vmatmul.mubr.f32.gmra.mrb[0].mxu0 %v1312
      %v1437 = vpop.f32.mrb[0].mxu0
      %v1438 = vadd.f32 %v1345, %v1437
      %v1439 = vpop.f32.mrb[0].mxu0
      %1440 = vmatprep.mubr.f32.mxu0 0.0
      %1441 = vmatmul.mubr.f32.gmra.mrb[0].mxu0 %v1313
      %v1442 = vpop.f32.mrb[0].mxu0
      %v1443 = vadd.f32 %v1345, %v1442
      %v1444 = vpop.f32.mrb[0].mxu0
      %1445 = vmatprep.mubr.f32.mxu0 0.0
      %1446 = vmatmul.mubr.f32.gmra.mrb[0].mxu0 %v1314
      %v1447 = vpop.f32.mrb[0].mxu0
      %v1448 = vadd.f32 %v1345, %v1447
      %v1449 = vpop.f32.mrb[0].mxu0
      %1450 = vmatprep.mubr.f32.mxu0 0.0
      %1451 = vmatmul.mubr.f32.gmra.mrb[0].mxu0 %v1315
      %v1452 = vpop.f32.mrb[0].mxu0
      %v1453 = vadd.f32 %v1345, %v1452
      %v1454 = vpop.f32.mrb[0].mxu0
      %1455 = vmatprep.mubr.f32.mxu0 0.0
      %1456 = vmatmul.mubr.f32.gmra.mrb[0].mxu0 %v1316
      %v1457 = vpop.f32.mrb[0].mxu0
      %v1458 = vadd.f32 %v1345, %v1457
      %v1459 = vpop.f32.mrb[0].mxu0
      %1460 = vmatprep.mubr.f32.mxu0 0.0
      %1461 = vmatmul.mubr.f32.gmra.mrb[0].mxu0 %v1317
      %v1462 = vpop.f32.mrb[0].mxu0
      %v1463 = vadd.f32 %v1345, %v1462
      %v1464 = vpop.f32.mrb[0].mxu0
      %1465 = vmatprep.mubr.f32.mxu0 0.0
      %1466 = vmatmul.mubr.f32.gmra.mrb[0].mxu0 %v1318
      %v1467 = vpop.f32.mrb[0].mxu0
      %v1468 = vadd.f32 %v1345, %v1467
      %v1469 = vpop.f32.mrb[0].mxu0
      %1470 = vmatprep.mubr.f32.mxu0 0.0
      %1471 = vmatmul.mubr.f32.gmra.mrb[0].mxu0 %v1319
      %v1472 = vpop.f32.mrb[0].mxu0
      %v1473 = vadd.f32 %v1345, %v1472
      %v1474 = vpop.f32.mrb[0].mxu0
      %1475 = vmatprep.mubr.f32.mxu0 0.0
      %1476 = vmatmul.mubr.f32.gmra.mrb[0].mxu0 %v1320
      %v1477 = vpop.f32.mrb[0].mxu0
      %v1478 = vadd.f32 %v1345, %v1477
      %v1479 = vpop.f32.mrb[0].mxu0
      %1480 = vmatprep.mubr.f32.mxu0 0.0
      %1481 = vmatmul.mubr.f32.gmra.mrb[0].mxu0 %v1321
      %v1482 = vpop.f32.mrb[0].mxu0
      %v1483 = vadd.f32 %v1345, %v1482
      %v1484 = vpop.f32.mrb[0].mxu0
      %1485 = vmatprep.mubr.f32.mxu0 0.0
      %1486 = vmatmul.mubr.f32.gmra.mrb[0].mxu0 %v1322
      %v1487 = vpop.f32.mrb[0].mxu0
      %v1488 = vadd.f32 %v1345, %v1487
      %v1489 = vpop.f32.mrb[0].mxu0
      %1490 = vmatprep.mubr.f32.mxu0 0.0
      %1491 = vmatmul.mubr.f32.gmra.mrb[0].mxu0 %v1323
      %v1492 = vpop.f32.mrb[0].mxu0
      %v1493 = vadd.f32 %v1345, %v1492
      %v1494 = vpop.f32.mrb[0].mxu0
      %1495 = vmatprep.mubr.f32.mxu0 0.0
      %1496 = vmatmul.mubr.f32.gmra.mrb[0].mxu0 %v1324
      %v1497 = vpop.f32.mrb[0].mxu0
      %v1498 = vadd.f32 %v1345, %v1497
      %v1499 = vpop.f32.mrb[0].mxu0
      %1500 = vmatprep.mubr.f32.mxu0 0.0
      %1501 = vmatmul.mubr.f32.gmra.mrb[0].mxu0 %v1325
      %v1502 = vpop.f32.mrb[0].mxu0
      %v1503 = vadd.f32 %v1345, %v1502
      %v1504 = vpop.f32.mrb[0].mxu0
      %1505 = vdwg.mxu0
      %vm1506 = vcmask 64512
      %1507 = vst.msk [vmem:[%s226] sm:$0xff] %vm1506, %v1413
      %1508 = vst.msk [vmem:[%s226 + $0x8] sm:$0xff] %vm1506, %v1418
      %1509 = vst.msk [vmem:[%s226 + $0x10] sm:$0xff] %vm1506, %v1423
      %1510 = vst.msk [vmem:[%s226 + $0x18] sm:$0xff] %vm1506, %v1428
      %1511 = vst.msk [vmem:[%s226 + $0x20] sm:$0xff] %vm1506, %v1433
      %1512 = vst.msk [vmem:[%s226 + $0x28] sm:$0xff] %vm1506, %v1438
      %1513 = vst.msk [vmem:[%s226 + $0x30] sm:$0xff] %vm1506, %v1443
      %1514 = vst.msk [vmem:[%s226 + $0x38] sm:$0xff] %vm1506, %v1448
      %1515 = vst.msk [vmem:[%s226 + $0x40] sm:$0xff] %vm1506, %v1453
      %1516 = vst.msk [vmem:[%s226 + $0x48] sm:$0xff] %vm1506, %v1458
      %1517 = vst.msk [vmem:[%s226 + $0x50] sm:$0xff] %vm1506, %v1463
      %1518 = vst.msk [vmem:[%s226 + $0x58] sm:$0xff] %vm1506, %v1468
      %1519 = vst.msk [vmem:[%s226 + $0x60] sm:$0xff] %vm1506, %v1473
      %1520 = vst.msk [vmem:[%s226 + $0x68] sm:$0xff] %vm1506, %v1478
      %1521 = vst.msk [vmem:[%s226 + $0x70] sm:$0xff] %vm1506, %v1483
      %1522 = vst.msk [vmem:[%s226 + $0x78] sm:$0xff] %vm1506, %v1488
      %1523 = vst.msk [vmem:[%s226 + $0x80] sm:$0xff] %vm1506, %v1493
      %1524 = vst.msk [vmem:[%s226 + $0x88] sm:$0xff] %vm1506, %v1498
      %1525 = vst.msk [vmem:[%s226 + $0x90] sm:$0xff] %vm1506, %v1503
      %s1526 = smul.u32 19, %s16
      %p1527 = scmp.lt.s32.totalorder %s1526, 37
      %s1528 = scalar_select %p1527, %s1526, 37
      %s1529 = smul.addr %s1528, 8
      %s1530 = scalar_lea.vmem %s5, %s1529
      // Predicated region
      $region41: #{pinn_forward.1} parent=39 // pred_check
        %p1531 = pneg %p144
      $region42: #{pinn_forward.1} parent=39 // pred_check_branch
        %1533 = sbr.rel (%p1531) target = $region44
      $region43: #{pinn_forward.1} parent=39 // pred_region
        %s1534 = smul.u32 19, %s16
      $region44: #{pinn_forward.1} parent=39 // pred_fallthru
        _
    $region40: #{pinn_forward.1} parent=5 // pred_fallthru
      _
    %p1535 = scmp.le.s32.totalorder 2, %s11
    // Predicated region
    $region45: #{pinn_forward.1} parent=5 // pred_check
      %p1536 = pneg %p1535
    $region46: #{pinn_forward.1} parent=5 // pred_check_branch
      %1538 = sbr.rel (%p1536) target = $region48
    $region47: #{pinn_forward.1} parent=5 // pred_region
      %s1539 = ssub.s32 %s11, 2
      // Predicated region
      $region49: #{pinn_forward.1} parent=47 // pred_check
        %p1540 = pneg %p150
      $region50: #{pinn_forward.1} parent=47 // pred_check_branch
        %1542 = sbr.rel (%p1540) target = $region52
      $region51: #{pinn_forward.1} parent=47 // pred_region
        %s1543 = smul.u32 19, %s17
        %p1544 = scmp.lt.s32.totalorder %s1543, 37
        %s1545 = scalar_select %p1544, %s1543, 37
        %s1546 = smul.addr %s1545, 8
        %s1547 = scalar_lea.vmem %s5, %s1546
      $region52: #{pinn_forward.1} parent=47 // pred_fallthru
        _
    $region48: #{pinn_forward.1} parent=5 // pred_fallthru
      _
  $region6: #{pinn_forward.1} parent=0 // loop_footer
    %s15 = sadd.s32 1, %s11
  $region7: #{pinn_forward.1} parent=0 // loop_footer_branch
    %10 = sbr.rel target = $region3
  $region8: #{pinn_forward.1} parent=0 // loop_exit
    _

</llo_original>
